<compile_context>
chip_gen: v6e
topology: v6e:2x2x1
jax: 0.10.0
libtpu: 0.0.40
codegen_flags: <defaults>
</compile_context>

<pallas_src>
import numpy as np
import jax
import jax.numpy as jnp
from jax.experimental import pallas as pl
from jax.experimental.pallas import tpu as pltpu


# (input_row_offset a, kernel_tap ky) pairs per output-row parity of the k=4 s=2 p=1
# ConvTranspose2d (same table for columns).
_TAPS = {0: ((-1, 3), (0, 1)), 1: ((0, 2), (1, 0))}


# ---------------------------------------------------------------------------
# weight preparation (folding + phase decomposition), wrapper-side, tiny
# ---------------------------------------------------------------------------
def _build_fused_weights(params):
    w_enc = params["w_enc"].astype(jnp.float32)              # (Coc, Cin, 4, 4)
    b_enc = params["b_enc"].astype(jnp.float32)              # (Coc,)
    wi = params["w_inner"][:, :, 0, 0].astype(jnp.float32)   # (C2, Coc)
    b_in = params["b_inner"].astype(jnp.float32)             # (C2,)
    w_dec = params["w_dec"].astype(jnp.float32)               # (C2, Cout, 4, 4)
    b_dec = params["b_dec"].astype(jnp.float32)               # (Cout,)

    c2, _ = wi.shape
    cin = w_enc.shape[1]
    cout = w_dec.shape[1]

    # --- encoder conv with the linear inner 1x1 folded in ---
    w_comb = jnp.einsum("oc,cikl->oikl", wi, w_enc)           # (C2, Cin, 4, 4)
    b_comb = wi @ b_enc + b_in                                # (C2,)
    # tap reorder: ky = 2*dr + py, kx = 2*ds + px  ->  leading index (py, px, dr, ds)
    wk = w_comb.reshape(c2, cin, 2, 2, 2, 2)                  # (c2, ci, dr, py, ds, px)
    w_enc_f = jnp.transpose(wk, (3, 5, 2, 4, 0, 1)).reshape(16, c2, cin)

    # --- decoder: 4 output phases merged over the 3x3 z-neighborhood ---
    wd = jnp.zeros((3, 3, 2, 2, cout, c2), jnp.float32)
    for dy in (0, 1):
        for dx in (0, 1):
            for (a, ky) in _TAPS[dy]:
                for (b, kx) in _TAPS[dx]:
                    wd = wd.at[a + 1, b + 1, dy, dx].set(w_dec[:, :, ky, kx].T)
    w_dec_f = wd.reshape(9, 4 * cout, c2)
    b_dec_f = jnp.tile(b_dec, 4)

    return (w_enc_f.astype(jnp.bfloat16), b_comb[:, None],
            w_dec_f.astype(jnp.bfloat16), b_dec_f[:, None])


def _polyphase_split(x_bf16, R):
    """x (N, Cin, H, W) -> (N, 4*Cin, (Ho+1)*R) flat phase planes with row stride R.
    Phase (py, px) element (r, s) = zero-padded x at (2r+py, 2s+px), at flat col r*R+s."""
    n, cin, h, w = x_bf16.shape
    ho, wo = h // 2, w // 2
    xp = jnp.pad(x_bf16, ((0, 0), (0, 0), (1, 1), (1, 1)))
    xp = xp.reshape(n, cin, ho + 1, 2, wo + 1, 2)
    xp = jnp.transpose(xp, (0, 3, 5, 1, 2, 4))                # (N, py, px, Cin, Ho+1, Wo+1)
    xp = jnp.pad(xp, ((0, 0),) * 5 + ((0, R - (wo + 1)),))    # pad row length -> R
    return xp.reshape(n, 4 * cin, (ho + 1) * R)


# ---------------------------------------------------------------------------
# fully fused forward
# ---------------------------------------------------------------------------
def outermost_block_forward(x_nchw, params):
    n, cin, h, w = x_nchw.shape
    assert h % 2 == 0 and w % 2 == 0
    ho, wo = h // 2, w // 2
    R = wo + 2                       # shared flat row stride (1-wide halo for the decoder)
    Lz = (ho - 1) * R + wo           # flat length of the z / decoder-output span
    Lx = (ho + 1) * R                # flat length of each encoder input phase plane

    w_enc_f, b_enc_f, w_dec_f, b_dec_f = _build_fused_weights(params)
    c2 = w_enc_f.shape[1]
    cout = w_dec_f.shape[1] // 4

    xph = _polyphase_split(x_nchw.astype(jnp.bfloat16), R)    # (N, 4*Cin, Lx) bf16

    # mask that zeroes the junk (halo) columns of the flat z span
    cols = np.arange(Lz)
    cmod = (cols + R + 1) % R
    zmask = jnp.asarray(((cmod >= 1) & (cmod <= wo)).astype(np.float32))[None, :]  # (1, Lz)

    def kernel(xph_ref, zmask_ref, wenc_ref, benc_ref, wdec_ref, bdec_ref,
               out_ref, zbuf_ref):
        # ---- encoder conv (k4 s2 p1) with the inner 1x1 folded in, + ReLU ----
        eacc = jnp.zeros((c2, Lz), jnp.float32)
        t = 0
        for py in range(2):
            for px in range(2):
                rbase = (py * 2 + px) * cin
                for dr in range(2):
                    for ds in range(2):
                        off = dr * R + ds
                        xt = xph_ref[rbase:rbase + cin, off:off + Lz]   # (Cin, Lz) bf16
                        eacc += jnp.dot(wenc_ref[t], xt,
                                        preferred_element_type=jnp.float32)
                        t += 1
        z = jnp.maximum(eacc + benc_ref[...], 0.0) * zmask_ref[...]     # (C2, Lz) f32

        # ---- z (with its zero halo) lives only in VMEM, stored bf16 ----
        zbuf_ref[...] = jnp.zeros_like(zbuf_ref)
        zbuf_ref[:, R + 1:R + 1 + Lz] = z.astype(jnp.bfloat16)

        # ---- ConvTranspose2d (k4 s2 p1): 4 output phases merged, + Tanh ----
        dacc = jnp.zeros((4 * cout, Lz), jnp.float32)
        for a in range(3):
            for b in range(3):
                zt = zbuf_ref[:, a * R + b:a * R + b + Lz]              # (C2, Lz) bf16
                dacc += jnp.dot(wdec_ref[a * 3 + b], zt,
                                preferred_element_type=jnp.float32)
        out_ref[...] = jnp.tanh(dacc + bdec_ref[...])

    cost = pl.CostEstimate(
        flops=2 * n * Lz * (16 * cin * c2 + 9 * c2 * 4 * cout),
        transcendentals=n * 4 * cout * Lz,
        bytes_accessed=2 * (n * 4 * cin * Lx + 16 * c2 * cin + 9 * 4 * cout * c2)
        + 4 * (n * 4 * cout * Lz + c2 + 4 * cout + Lz),
    )

    out_raw = pl.pallas_call(
        kernel,
        out_shape=jax.ShapeDtypeStruct((n, 4 * cout, Lz), jnp.float32),
        grid=(n,),
        in_specs=[
            pl.BlockSpec((None, 4 * cin, Lx), lambda i: (i, 0, 0)),     # per-image phase planes
            pl.BlockSpec((1, Lz), lambda i: (0, 0)),                    # halo-column mask
            pl.BlockSpec((16, c2, cin), lambda i: (0, 0, 0)),           # folded encoder weight
            pl.BlockSpec((c2, 1), lambda i: (0, 0)),                    # folded encoder bias
            pl.BlockSpec((9, 4 * cout, c2), lambda i: (0, 0, 0)),       # merged decoder weight
            pl.BlockSpec((4 * cout, 1), lambda i: (0, 0)),              # decoder bias (x4 phases)
        ],
        out_specs=pl.BlockSpec((None, 4 * cout, Lz), lambda i: (i, 0, 0)),
        scratch_shapes=[pltpu.VMEM((c2, (ho + 2) * R), jnp.bfloat16)],  # zero-haloed z
        compiler_params=pltpu.CompilerParams(
            dimension_semantics=("parallel",),
            vmem_limit_bytes=32 * 1024 * 1024),
        cost_estimate=cost,
    )(xph, zmask, w_enc_f, b_enc_f, w_dec_f, b_dec_f)

    # un-flatten + interleave the 4 output phases into NCHW (one small XLA pass)
    o = jnp.pad(out_raw, ((0, 0), (0, 0), (0, ho * R - Lz)))
    o = o.reshape(n, 2, 2, cout, ho, R)[..., :wo]             # (N, dy, dx, Cout, Ho, Wo)
    return jnp.transpose(o, (0, 3, 4, 1, 5, 2)).reshape(n, cout, 2 * ho, 2 * wo)


# ---------------------------------------------------------------------------
# pure-JAX f32 reference (original op sequence, unfolded)
# ---------------------------------------------------------------------------
def _reference_forward(x, params):
    dn = ("NCHW", "OIHW", "NCHW")
    hp = jax.lax.Precision.HIGHEST
    y = jax.lax.conv_general_dilated(x, params["w_enc"], (2, 2), ((1, 1), (1, 1)),
                                     dimension_numbers=dn, precision=hp)
    y = y + params["b_enc"][None, :, None, None]
    y = jax.lax.conv_general_dilated(y, params["w_inner"], (1, 1), ((0, 0), (0, 0)),
                                     dimension_numbers=dn, precision=hp)
    y = jnp.maximum(y + params["b_inner"][None, :, None, None], 0.0)
    w_dec_conv = jnp.flip(params["w_dec"], axis=(2, 3)).transpose(1, 0, 2, 3)
    o = jax.lax.conv_general_dilated(y, w_dec_conv, (1, 1), ((2, 2), (2, 2)),
                                     lhs_dilation=(2, 2), dimension_numbers=dn,
                                     precision=hp)
    return jnp.tanh(o + params["b_dec"][None, :, None, None])


# ---------------------------------------------------------------------------
# deterministic parameter init (normal, mean=0, std=0.02) — synthetic weights
# ---------------------------------------------------------------------------
def init_params(key, cin, coc):
    ks = jax.random.split(key, 6)
    std = 0.02
    return {
        # Conv2d(cin, coc, 4, 4): (Cout, Cin, KH, KW)
        "w_enc": std * jax.random.normal(ks[0], (coc, cin, 4, 4), jnp.float32),
        "b_enc": std * jax.random.normal(ks[1], (coc,), jnp.float32),
        # synthetic inner 1x1 conv: (2*coc, coc, 1, 1)
        "w_inner": std * jax.random.normal(ks[2], (2 * coc, coc, 1, 1), jnp.float32),
        "b_inner": std * jax.random.normal(ks[3], (2 * coc,), jnp.float32),
        # ConvTranspose2d(2*coc, cin, 4, 4): (Cin_t, Cout_t, KH, KW)
        "w_dec": std * jax.random.normal(ks[4], (2 * coc, cin, 4, 4), jnp.float32),
        "b_dec": std * jax.random.normal(ks[5], (cin,), jnp.float32),
    }


if __name__ == "__main__":
    key = jax.random.PRNGKey(0)
    k_x, k_p = jax.random.split(key)

    batch, cin, coc, hw = 2, 4, 8, 16
    x = jax.random.normal(k_x, (batch, cin, hw, hw), jnp.float32)    # NCHW input
    params = init_params(k_p, cin, coc)

    fwd = jax.jit(outermost_block_forward)
    out = jax.block_until_ready(fwd(x, params))

    assert out.shape == (batch, cin, hw, hw), out.shape
    assert bool(jnp.all(jnp.isfinite(out)))
    assert bool(jnp.all(jnp.abs(out) <= 1.0 + 1e-6))    # tanh output range

    ref = _reference_forward(x, params)
    max_err = float(jnp.max(jnp.abs(out - ref)))
    assert max_err < 2e-3, f"mismatch vs reference: {max_err}"

    print("KERNEL_OK")
</pallas_src>

<mosaic_0001>
module attributes {stable_mosaic.version = 11 : i64} {
  func.func @kernel(%arg0: i32, %arg1: memref<1x16x90xbf16, #tpu.memory_space<vmem>>, %arg2: memref<1x78xf32, #tpu.memory_space<vmem>>, %arg3: memref<16x16x4xbf16, #tpu.memory_space<vmem>>, %arg4: memref<16x1xf32, #tpu.memory_space<vmem>>, %arg5: memref<9x16x16xbf16, #tpu.memory_space<vmem>>, %arg6: memref<16x1xf32, #tpu.memory_space<vmem>>, %arg7: memref<1x16x78xf32, #tpu.memory_space<vmem>>, %arg8: memref<16x100xbf16, #tpu.memory_space<vmem>>) attributes {dimension_semantics = [#tpu.dimension_semantics<parallel>], iteration_bounds = array<i64: 2>, scalar_prefetch = 0 : i64, scratch_operands = 1 : i64, tpu.core_type = #tpu.core_type<tc>, window_params = [{transform_indices = @transform_0, window_bounds = array<i64: 1, 16, 90>}, {pipeline_mode = #tpu.pipeline_mode<synchronous>, transform_indices = @transform_1, window_bounds = array<i64: 1, 78>}, {pipeline_mode = #tpu.pipeline_mode<synchronous>, transform_indices = @transform_2, window_bounds = array<i64: 16, 16, 4>}, {pipeline_mode = #tpu.pipeline_mode<synchronous>, transform_indices = @transform_3, window_bounds = array<i64: 16, 1>}, {pipeline_mode = #tpu.pipeline_mode<synchronous>, transform_indices = @transform_4, window_bounds = array<i64: 9, 16, 16>}, {pipeline_mode = #tpu.pipeline_mode<synchronous>, transform_indices = @transform_5, window_bounds = array<i64: 16, 1>}, {transform_indices = @transform_6, window_bounds = array<i64: 1, 16, 78>}]} {
    %cst = arith.constant 0.000000e+00 : f32
    %0 = vector.broadcast %cst : f32 to vector<16x78xf32>
    %c0 = arith.constant 0 : index
    %c0_0 = arith.constant 0 : index
    %c0_1 = arith.constant 0 : index
    %1 = vector.load %arg1[%c0, %c0_0, %c0_1] : memref<1x16x90xbf16, #tpu.memory_space<vmem>>, vector<1x4x78xbf16>
    %2 = vector.shape_cast %1 : vector<1x4x78xbf16> to vector<4x78xbf16>
    %c0_2 = arith.constant 0 : index
    %c0_3 = arith.constant 0 : index
    %c0_4 = arith.constant 0 : index
    %3 = vector.load %arg3[%c0_2, %c0_3, %c0_4] : memref<16x16x4xbf16, #tpu.memory_space<vmem>>, vector<1x16x4xbf16>
    %4 = vector.shape_cast %3 : vector<1x16x4xbf16> to vector<16x4xbf16>
    %cst_5 = arith.constant dense<0.000000e+00> : vector<16x78xf32>
    %5 = tpu.matmul %4, %2, %cst_5 {dimension_numbers = #tpu.dot_dimension_numbers<[1], [0], [0], [1], [0, 0, 1, 1], [], []>} : vector<16x4xbf16>, vector<4x78xbf16>, vector<16x78xf32> -> vector<16x78xf32>
    %6 = arith.addf %0, %5 : vector<16x78xf32>
    %c0_6 = arith.constant 0 : index
    %c0_7 = arith.constant 0 : index
    %c1 = arith.constant 1 : index
    %7 = vector.load %arg1[%c0_6, %c0_7, %c1] : memref<1x16x90xbf16, #tpu.memory_space<vmem>>, vector<1x4x78xbf16>
    %8 = vector.shape_cast %7 : vector<1x4x78xbf16> to vector<4x78xbf16>
    %c1_8 = arith.constant 1 : index
    %c0_9 = arith.constant 0 : index
    %c0_10 = arith.constant 0 : index
    %9 = vector.load %arg3[%c1_8, %c0_9, %c0_10] : memref<16x16x4xbf16, #tpu.memory_space<vmem>>, vector<1x16x4xbf16>
    %10 = vector.shape_cast %9 : vector<1x16x4xbf16> to vector<16x4xbf16>
    %cst_11 = arith.constant dense<0.000000e+00> : vector<16x78xf32>
    %11 = tpu.matmul %10, %8, %cst_11 {dimension_numbers = #tpu.dot_dimension_numbers<[1], [0], [0], [1], [0, 0, 1, 1], [], []>} : vector<16x4xbf16>, vector<4x78xbf16>, vector<16x78xf32> -> vector<16x78xf32>
    %12 = arith.addf %6, %11 : vector<16x78xf32>
    %c0_12 = arith.constant 0 : index
    %c0_13 = arith.constant 0 : index
    %c10 = arith.constant 10 : index
    %13 = vector.load %arg1[%c0_12, %c0_13, %c10] : memref<1x16x90xbf16, #tpu.memory_space<vmem>>, vector<1x4x78xbf16>
    %14 = vector.shape_cast %13 : vector<1x4x78xbf16> to vector<4x78xbf16>
    %c2 = arith.constant 2 : index
    %c0_14 = arith.constant 0 : index
    %c0_15 = arith.constant 0 : index
    %15 = vector.load %arg3[%c2, %c0_14, %c0_15] : memref<16x16x4xbf16, #tpu.memory_space<vmem>>, vector<1x16x4xbf16>
    %16 = vector.shape_cast %15 : vector<1x16x4xbf16> to vector<16x4xbf16>
    %cst_16 = arith.constant dense<0.000000e+00> : vector<16x78xf32>
    %17 = tpu.matmul %16, %14, %cst_16 {dimension_numbers = #tpu.dot_dimension_numbers<[1], [0], [0], [1], [0, 0, 1, 1], [], []>} : vector<16x4xbf16>, vector<4x78xbf16>, vector<16x78xf32> -> vector<16x78xf32>
    %18 = arith.addf %12, %17 : vector<16x78xf32>
    %c0_17 = arith.constant 0 : index
    %c0_18 = arith.constant 0 : index
    %c11 = arith.constant 11 : index
    %19 = vector.load %arg1[%c0_17, %c0_18, %c11] : memref<1x16x90xbf16, #tpu.memory_space<vmem>>, vector<1x4x78xbf16>
    %20 = vector.shape_cast %19 : vector<1x4x78xbf16> to vector<4x78xbf16>
    %c3 = arith.constant 3 : index
    %c0_19 = arith.constant 0 : index
    %c0_20 = arith.constant 0 : index
    %21 = vector.load %arg3[%c3, %c0_19, %c0_20] : memref<16x16x4xbf16, #tpu.memory_space<vmem>>, vector<1x16x4xbf16>
    %22 = vector.shape_cast %21 : vector<1x16x4xbf16> to vector<16x4xbf16>
    %cst_21 = arith.constant dense<0.000000e+00> : vector<16x78xf32>
    %23 = tpu.matmul %22, %20, %cst_21 {dimension_numbers = #tpu.dot_dimension_numbers<[1], [0], [0], [1], [0, 0, 1, 1], [], []>} : vector<16x4xbf16>, vector<4x78xbf16>, vector<16x78xf32> -> vector<16x78xf32>
    %24 = arith.addf %18, %23 : vector<16x78xf32>
    %c0_22 = arith.constant 0 : index
    %c4 = arith.constant 4 : index
    %c0_23 = arith.constant 0 : index
    %25 = vector.load %arg1[%c0_22, %c4, %c0_23] : memref<1x16x90xbf16, #tpu.memory_space<vmem>>, vector<1x4x78xbf16>
    %26 = vector.shape_cast %25 : vector<1x4x78xbf16> to vector<4x78xbf16>
    %c4_24 = arith.constant 4 : index
    %c0_25 = arith.constant 0 : index
    %c0_26 = arith.constant 0 : index
    %27 = vector.load %arg3[%c4_24, %c0_25, %c0_26] : memref<16x16x4xbf16, #tpu.memory_space<vmem>>, vector<1x16x4xbf16>
    %28 = vector.shape_cast %27 : vector<1x16x4xbf16> to vector<16x4xbf16>
    %cst_27 = arith.constant dense<0.000000e+00> : vector<16x78xf32>
    %29 = tpu.matmul %28, %26, %cst_27 {dimension_numbers = #tpu.dot_dimension_numbers<[1], [0], [0], [1], [0, 0, 1, 1], [], []>} : vector<16x4xbf16>, vector<4x78xbf16>, vector<16x78xf32> -> vector<16x78xf32>
    %30 = arith.addf %24, %29 : vector<16x78xf32>
    %c0_28 = arith.constant 0 : index
    %c4_29 = arith.constant 4 : index
    %c1_30 = arith.constant 1 : index
    %31 = vector.load %arg1[%c0_28, %c4_29, %c1_30] : memref<1x16x90xbf16, #tpu.memory_space<vmem>>, vector<1x4x78xbf16>
    %32 = vector.shape_cast %31 : vector<1x4x78xbf16> to vector<4x78xbf16>
    %c5 = arith.constant 5 : index
    %c0_31 = arith.constant 0 : index
    %c0_32 = arith.constant 0 : index
    %33 = vector.load %arg3[%c5, %c0_31, %c0_32] : memref<16x16x4xbf16, #tpu.memory_space<vmem>>, vector<1x16x4xbf16>
    %34 = vector.shape_cast %33 : vector<1x16x4xbf16> to vector<16x4xbf16>
    %cst_33 = arith.constant dense<0.000000e+00> : vector<16x78xf32>
    %35 = tpu.matmul %34, %32, %cst_33 {dimension_numbers = #tpu.dot_dimension_numbers<[1], [0], [0], [1], [0, 0, 1, 1], [], []>} : vector<16x4xbf16>, vector<4x78xbf16>, vector<16x78xf32> -> vector<16x78xf32>
    %36 = arith.addf %30, %35 : vector<16x78xf32>
    %c0_34 = arith.constant 0 : index
    %c4_35 = arith.constant 4 : index
    %c10_36 = arith.constant 10 : index
    %37 = vector.load %arg1[%c0_34, %c4_35, %c10_36] : memref<1x16x90xbf16, #tpu.memory_space<vmem>>, vector<1x4x78xbf16>
    %38 = vector.shape_cast %37 : vector<1x4x78xbf16> to vector<4x78xbf16>
    %c6 = arith.constant 6 : index
    %c0_37 = arith.constant 0 : index
    %c0_38 = arith.constant 0 : index
    %39 = vector.load %arg3[%c6, %c0_37, %c0_38] : memref<16x16x4xbf16, #tpu.memory_space<vmem>>, vector<1x16x4xbf16>
    %40 = vector.shape_cast %39 : vector<1x16x4xbf16> to vector<16x4xbf16>
    %cst_39 = arith.constant dense<0.000000e+00> : vector<16x78xf32>
    %41 = tpu.matmul %40, %38, %cst_39 {dimension_numbers = #tpu.dot_dimension_numbers<[1], [0], [0], [1], [0, 0, 1, 1], [], []>} : vector<16x4xbf16>, vector<4x78xbf16>, vector<16x78xf32> -> vector<16x78xf32>
    %42 = arith.addf %36, %41 : vector<16x78xf32>
    %c0_40 = arith.constant 0 : index
    %c4_41 = arith.constant 4 : index
    %c11_42 = arith.constant 11 : index
    %43 = vector.load %arg1[%c0_40, %c4_41, %c11_42] : memref<1x16x90xbf16, #tpu.memory_space<vmem>>, vector<1x4x78xbf16>
    %44 = vector.shape_cast %43 : vector<1x4x78xbf16> to vector<4x78xbf16>
    %c7 = arith.constant 7 : index
    %c0_43 = arith.constant 0 : index
    %c0_44 = arith.constant 0 : index
    %45 = vector.load %arg3[%c7, %c0_43, %c0_44] : memref<16x16x4xbf16, #tpu.memory_space<vmem>>, vector<1x16x4xbf16>
    %46 = vector.shape_cast %45 : vector<1x16x4xbf16> to vector<16x4xbf16>
    %cst_45 = arith.constant dense<0.000000e+00> : vector<16x78xf32>
    %47 = tpu.matmul %46, %44, %cst_45 {dimension_numbers = #tpu.dot_dimension_numbers<[1], [0], [0], [1], [0, 0, 1, 1], [], []>} : vector<16x4xbf16>, vector<4x78xbf16>, vector<16x78xf32> -> vector<16x78xf32>
    %48 = arith.addf %42, %47 : vector<16x78xf32>
    %c0_46 = arith.constant 0 : index
    %c8 = arith.constant 8 : index
    %c0_47 = arith.constant 0 : index
    %49 = vector.load %arg1[%c0_46, %c8, %c0_47] : memref<1x16x90xbf16, #tpu.memory_space<vmem>>, vector<1x4x78xbf16>
    %50 = vector.shape_cast %49 : vector<1x4x78xbf16> to vector<4x78xbf16>
    %c8_48 = arith.constant 8 : index
    %c0_49 = arith.constant 0 : index
    %c0_50 = arith.constant 0 : index
    %51 = vector.load %arg3[%c8_48, %c0_49, %c0_50] : memref<16x16x4xbf16, #tpu.memory_space<vmem>>, vector<1x16x4xbf16>
    %52 = vector.shape_cast %51 : vector<1x16x4xbf16> to vector<16x4xbf16>
    %cst_51 = arith.constant dense<0.000000e+00> : vector<16x78xf32>
    %53 = tpu.matmul %52, %50, %cst_51 {dimension_numbers = #tpu.dot_dimension_numbers<[1], [0], [0], [1], [0, 0, 1, 1], [], []>} : vector<16x4xbf16>, vector<4x78xbf16>, vector<16x78xf32> -> vector<16x78xf32>
    %54 = arith.addf %48, %53 : vector<16x78xf32>
    %c0_52 = arith.constant 0 : index
    %c8_53 = arith.constant 8 : index
    %c1_54 = arith.constant 1 : index
    %55 = vector.load %arg1[%c0_52, %c8_53, %c1_54] : memref<1x16x90xbf16, #tpu.memory_space<vmem>>, vector<1x4x78xbf16>
    %56 = vector.shape_cast %55 : vector<1x4x78xbf16> to vector<4x78xbf16>
    %c9 = arith.constant 9 : index
    %c0_55 = arith.constant 0 : index
    %c0_56 = arith.constant 0 : index
    %57 = vector.load %arg3[%c9, %c0_55, %c0_56] : memref<16x16x4xbf16, #tpu.memory_space<vmem>>, vector<1x16x4xbf16>
    %58 = vector.shape_cast %57 : vector<1x16x4xbf16> to vector<16x4xbf16>
    %cst_57 = arith.constant dense<0.000000e+00> : vector<16x78xf32>
    %59 = tpu.matmul %58, %56, %cst_57 {dimension_numbers = #tpu.dot_dimension_numbers<[1], [0], [0], [1], [0, 0, 1, 1], [], []>} : vector<16x4xbf16>, vector<4x78xbf16>, vector<16x78xf32> -> vector<16x78xf32>
    %60 = arith.addf %54, %59 : vector<16x78xf32>
    %c0_58 = arith.constant 0 : index
    %c8_59 = arith.constant 8 : index
    %c10_60 = arith.constant 10 : index
    %61 = vector.load %arg1[%c0_58, %c8_59, %c10_60] : memref<1x16x90xbf16, #tpu.memory_space<vmem>>, vector<1x4x78xbf16>
    %62 = vector.shape_cast %61 : vector<1x4x78xbf16> to vector<4x78xbf16>
    %c10_61 = arith.constant 10 : index
    %c0_62 = arith.constant 0 : index
    %c0_63 = arith.constant 0 : index
    %63 = vector.load %arg3[%c10_61, %c0_62, %c0_63] : memref<16x16x4xbf16, #tpu.memory_space<vmem>>, vector<1x16x4xbf16>
    %64 = vector.shape_cast %63 : vector<1x16x4xbf16> to vector<16x4xbf16>
    %cst_64 = arith.constant dense<0.000000e+00> : vector<16x78xf32>
    %65 = tpu.matmul %64, %62, %cst_64 {dimension_numbers = #tpu.dot_dimension_numbers<[1], [0], [0], [1], [0, 0, 1, 1], [], []>} : vector<16x4xbf16>, vector<4x78xbf16>, vector<16x78xf32> -> vector<16x78xf32>
    %66 = arith.addf %60, %65 : vector<16x78xf32>
    %c0_65 = arith.constant 0 : index
    %c8_66 = arith.constant 8 : index
    %c11_67 = arith.constant 11 : index
    %67 = vector.load %arg1[%c0_65, %c8_66, %c11_67] : memref<1x16x90xbf16, #tpu.memory_space<vmem>>, vector<1x4x78xbf16>
    %68 = vector.shape_cast %67 : vector<1x4x78xbf16> to vector<4x78xbf16>
    %c11_68 = arith.constant 11 : index
    %c0_69 = arith.constant 0 : index
    %c0_70 = arith.constant 0 : index
    %69 = vector.load %arg3[%c11_68, %c0_69, %c0_70] : memref<16x16x4xbf16, #tpu.memory_space<vmem>>, vector<1x16x4xbf16>
    %70 = vector.shape_cast %69 : vector<1x16x4xbf16> to vector<16x4xbf16>
    %cst_71 = arith.constant dense<0.000000e+00> : vector<16x78xf32>
    %71 = tpu.matmul %70, %68, %cst_71 {dimension_numbers = #tpu.dot_dimension_numbers<[1], [0], [0], [1], [0, 0, 1, 1], [], []>} : vector<16x4xbf16>, vector<4x78xbf16>, vector<16x78xf32> -> vector<16x78xf32>
    %72 = arith.addf %66, %71 : vector<16x78xf32>
    %c0_72 = arith.constant 0 : index
    %c12 = arith.constant 12 : index
    %c0_73 = arith.constant 0 : index
    %73 = vector.load %arg1[%c0_72, %c12, %c0_73] : memref<1x16x90xbf16, #tpu.memory_space<vmem>>, vector<1x4x78xbf16>
    %74 = vector.shape_cast %73 : vector<1x4x78xbf16> to vector<4x78xbf16>
    %c12_74 = arith.constant 12 : index
    %c0_75 = arith.constant 0 : index
    %c0_76 = arith.constant 0 : index
    %75 = vector.load %arg3[%c12_74, %c0_75, %c0_76] : memref<16x16x4xbf16, #tpu.memory_space<vmem>>, vector<1x16x4xbf16>
    %76 = vector.shape_cast %75 : vector<1x16x4xbf16> to vector<16x4xbf16>
    %cst_77 = arith.constant dense<0.000000e+00> : vector<16x78xf32>
    %77 = tpu.matmul %76, %74, %cst_77 {dimension_numbers = #tpu.dot_dimension_numbers<[1], [0], [0], [1], [0, 0, 1, 1], [], []>} : vector<16x4xbf16>, vector<4x78xbf16>, vector<16x78xf32> -> vector<16x78xf32>
    %78 = arith.addf %72, %77 : vector<16x78xf32>
    %c0_78 = arith.constant 0 : index
    %c12_79 = arith.constant 12 : index
    %c1_80 = arith.constant 1 : index
    %79 = vector.load %arg1[%c0_78, %c12_79, %c1_80] : memref<1x16x90xbf16, #tpu.memory_space<vmem>>, vector<1x4x78xbf16>
    %80 = vector.shape_cast %79 : vector<1x4x78xbf16> to vector<4x78xbf16>
    %c13 = arith.constant 13 : index
    %c0_81 = arith.constant 0 : index
    %c0_82 = arith.constant 0 : index
    %81 = vector.load %arg3[%c13, %c0_81, %c0_82] : memref<16x16x4xbf16, #tpu.memory_space<vmem>>, vector<1x16x4xbf16>
    %82 = vector.shape_cast %81 : vector<1x16x4xbf16> to vector<16x4xbf16>
    %cst_83 = arith.constant dense<0.000000e+00> : vector<16x78xf32>
    %83 = tpu.matmul %82, %80, %cst_83 {dimension_numbers = #tpu.dot_dimension_numbers<[1], [0], [0], [1], [0, 0, 1, 1], [], []>} : vector<16x4xbf16>, vector<4x78xbf16>, vector<16x78xf32> -> vector<16x78xf32>
    %84 = arith.addf %78, %83 : vector<16x78xf32>
    %c0_84 = arith.constant 0 : index
    %c12_85 = arith.constant 12 : index
    %c10_86 = arith.constant 10 : index
    %85 = vector.load %arg1[%c0_84, %c12_85, %c10_86] : memref<1x16x90xbf16, #tpu.memory_space<vmem>>, vector<1x4x78xbf16>
    %86 = vector.shape_cast %85 : vector<1x4x78xbf16> to vector<4x78xbf16>
    %c14 = arith.constant 14 : index
    %c0_87 = arith.constant 0 : index
    %c0_88 = arith.constant 0 : index
    %87 = vector.load %arg3[%c14, %c0_87, %c0_88] : memref<16x16x4xbf16, #tpu.memory_space<vmem>>, vector<1x16x4xbf16>
    %88 = vector.shape_cast %87 : vector<1x16x4xbf16> to vector<16x4xbf16>
    %cst_89 = arith.constant dense<0.000000e+00> : vector<16x78xf32>
    %89 = tpu.matmul %88, %86, %cst_89 {dimension_numbers = #tpu.dot_dimension_numbers<[1], [0], [0], [1], [0, 0, 1, 1], [], []>} : vector<16x4xbf16>, vector<4x78xbf16>, vector<16x78xf32> -> vector<16x78xf32>
    %90 = arith.addf %84, %89 : vector<16x78xf32>
    %c0_90 = arith.constant 0 : index
    %c12_91 = arith.constant 12 : index
    %c11_92 = arith.constant 11 : index
    %91 = vector.load %arg1[%c0_90, %c12_91, %c11_92] : memref<1x16x90xbf16, #tpu.memory_space<vmem>>, vector<1x4x78xbf16>
    %92 = vector.shape_cast %91 : vector<1x4x78xbf16> to vector<4x78xbf16>
    %c15 = arith.constant 15 : index
    %c0_93 = arith.constant 0 : index
    %c0_94 = arith.constant 0 : index
    %93 = vector.load %arg3[%c15, %c0_93, %c0_94] : memref<16x16x4xbf16, #tpu.memory_space<vmem>>, vector<1x16x4xbf16>
    %94 = vector.shape_cast %93 : vector<1x16x4xbf16> to vector<16x4xbf16>
    %cst_95 = arith.constant dense<0.000000e+00> : vector<16x78xf32>
    %95 = tpu.matmul %94, %92, %cst_95 {dimension_numbers = #tpu.dot_dimension_numbers<[1], [0], [0], [1], [0, 0, 1, 1], [], []>} : vector<16x4xbf16>, vector<4x78xbf16>, vector<16x78xf32> -> vector<16x78xf32>
    %96 = arith.addf %90, %95 : vector<16x78xf32>
    %c0_96 = arith.constant 0 : index
    %c0_97 = arith.constant 0 : index
    %97 = vector.load %arg4[%c0_96, %c0_97] : memref<16x1xf32, #tpu.memory_space<vmem>>, vector<16x1xf32>
    %98 = vector.broadcast %97 : vector<16x1xf32> to vector<16x78xf32>
    %99 = arith.addf %96, %98 : vector<16x78xf32>
    %cst_98 = arith.constant 0.000000e+00 : f32
    %100 = vector.broadcast %cst_98 : f32 to vector<16x78xf32>
    %101 = arith.maximumf %99, %100 : vector<16x78xf32>
    %c0_99 = arith.constant 0 : index
    %c0_100 = arith.constant 0 : index
    %102 = vector.load %arg2[%c0_99, %c0_100] : memref<1x78xf32, #tpu.memory_space<vmem>>, vector<1x78xf32>
    %103 = vector.broadcast %102 : vector<1x78xf32> to vector<16x78xf32>
    %104 = arith.mulf %101, %103 : vector<16x78xf32>
    %cst_101 = arith.constant 0.000000e+00 : bf16
    %105 = vector.broadcast %cst_101 : bf16 to vector<16x100xbf16>
    %c0_102 = arith.constant 0 : index
    %c0_103 = arith.constant 0 : index
    %106 = vector.load %arg8[%c0_102, %c0_103] : memref<16x100xbf16, #tpu.memory_space<vmem>>, vector<16x100xbf16>
    tpu.vector_store %arg8[%c0_102, %c0_103], %105 {strides = array<i32>} : memref<16x100xbf16, #tpu.memory_space<vmem>>, vector<16x100xbf16>,
    %107 = arith.truncf %104 : vector<16x78xf32> to vector<16x78xbf16>
    %c0_104 = arith.constant 0 : index
    %c11_105 = arith.constant 11 : index
    %108 = vector.load %arg8[%c0_104, %c11_105] : memref<16x100xbf16, #tpu.memory_space<vmem>>, vector<16x78xbf16>
    tpu.vector_store %arg8[%c0_104, %c11_105], %107 {strides = array<i32>} : memref<16x100xbf16, #tpu.memory_space<vmem>>, vector<16x78xbf16>,
    %cst_106 = arith.constant 0.000000e+00 : f32
    %109 = vector.broadcast %cst_106 : f32 to vector<16x78xf32>
    %c0_107 = arith.constant 0 : index
    %c0_108 = arith.constant 0 : index
    %110 = vector.load %arg8[%c0_107, %c0_108] : memref<16x100xbf16, #tpu.memory_space<vmem>>, vector<16x78xbf16>
    %c0_109 = arith.constant 0 : index
    %c0_110 = arith.constant 0 : index
    %c0_111 = arith.constant 0 : index
    %111 = vector.load %arg5[%c0_109, %c0_110, %c0_111] : memref<9x16x16xbf16, #tpu.memory_space<vmem>>, vector<1x16x16xbf16>
    %112 = vector.shape_cast %111 : vector<1x16x16xbf16> to vector<16x16xbf16>
    %cst_112 = arith.constant dense<0.000000e+00> : vector<16x78xf32>
    %113 = tpu.matmul %112, %110, %cst_112 {dimension_numbers = #tpu.dot_dimension_numbers<[1], [0], [0], [1], [0, 0, 1, 1], [], []>} : vector<16x16xbf16>, vector<16x78xbf16>, vector<16x78xf32> -> vector<16x78xf32>
    %114 = arith.addf %109, %113 : vector<16x78xf32>
    %c0_113 = arith.constant 0 : index
    %c1_114 = arith.constant 1 : index
    %115 = vector.load %arg8[%c0_113, %c1_114] : memref<16x100xbf16, #tpu.memory_space<vmem>>, vector<16x78xbf16>
    %c1_115 = arith.constant 1 : index
    %c0_116 = arith.constant 0 : index
    %c0_117 = arith.constant 0 : index
    %116 = vector.load %arg5[%c1_115, %c0_116, %c0_117] : memref<9x16x16xbf16, #tpu.memory_space<vmem>>, vector<1x16x16xbf16>
    %117 = vector.shape_cast %116 : vector<1x16x16xbf16> to vector<16x16xbf16>
    %cst_118 = arith.constant dense<0.000000e+00> : vector<16x78xf32>
    %118 = tpu.matmul %117, %115, %cst_118 {dimension_numbers = #tpu.dot_dimension_numbers<[1], [0], [0], [1], [0, 0, 1, 1], [], []>} : vector<16x16xbf16>, vector<16x78xbf16>, vector<16x78xf32> -> vector<16x78xf32>
    %119 = arith.addf %114, %118 : vector<16x78xf32>
    %c0_119 = arith.constant 0 : index
    %c2_120 = arith.constant 2 : index
    %120 = vector.load %arg8[%c0_119, %c2_120] : memref<16x100xbf16, #tpu.memory_space<vmem>>, vector<16x78xbf16>
    %c2_121 = arith.constant 2 : index
    %c0_122 = arith.constant 0 : index
    %c0_123 = arith.constant 0 : index
    %121 = vector.load %arg5[%c2_121, %c0_122, %c0_123] : memref<9x16x16xbf16, #tpu.memory_space<vmem>>, vector<1x16x16xbf16>
    %122 = vector.shape_cast %121 : vector<1x16x16xbf16> to vector<16x16xbf16>
    %cst_124 = arith.constant dense<0.000000e+00> : vector<16x78xf32>
    %123 = tpu.matmul %122, %120, %cst_124 {dimension_numbers = #tpu.dot_dimension_numbers<[1], [0], [0], [1], [0, 0, 1, 1], [], []>} : vector<16x16xbf16>, vector<16x78xbf16>, vector<16x78xf32> -> vector<16x78xf32>
    %124 = arith.addf %119, %123 : vector<16x78xf32>
    %c0_125 = arith.constant 0 : index
    %c10_126 = arith.constant 10 : index
    %125 = vector.load %arg8[%c0_125, %c10_126] : memref<16x100xbf16, #tpu.memory_space<vmem>>, vector<16x78xbf16>
    %c3_127 = arith.constant 3 : index
    %c0_128 = arith.constant 0 : index
    %c0_129 = arith.constant 0 : index
    %126 = vector.load %arg5[%c3_127, %c0_128, %c0_129] : memref<9x16x16xbf16, #tpu.memory_space<vmem>>, vector<1x16x16xbf16>
    %127 = vector.shape_cast %126 : vector<1x16x16xbf16> to vector<16x16xbf16>
    %cst_130 = arith.constant dense<0.000000e+00> : vector<16x78xf32>
    %128 = tpu.matmul %127, %125, %cst_130 {dimension_numbers = #tpu.dot_dimension_numbers<[1], [0], [0], [1], [0, 0, 1, 1], [], []>} : vector<16x16xbf16>, vector<16x78xbf16>, vector<16x78xf32> -> vector<16x78xf32>
    %129 = arith.addf %124, %128 : vector<16x78xf32>
    %c0_131 = arith.constant 0 : index
    %c11_132 = arith.constant 11 : index
    %130 = vector.load %arg8[%c0_131, %c11_132] : memref<16x100xbf16, #tpu.memory_space<vmem>>, vector<16x78xbf16>
    %c4_133 = arith.constant 4 : index
    %c0_134 = arith.constant 0 : index
    %c0_135 = arith.constant 0 : index
    %131 = vector.load %arg5[%c4_133, %c0_134, %c0_135] : memref<9x16x16xbf16, #tpu.memory_space<vmem>>, vector<1x16x16xbf16>
    %132 = vector.shape_cast %131 : vector<1x16x16xbf16> to vector<16x16xbf16>
    %cst_136 = arith.constant dense<0.000000e+00> : vector<16x78xf32>
    %133 = tpu.matmul %132, %130, %cst_136 {dimension_numbers = #tpu.dot_dimension_numbers<[1], [0], [0], [1], [0, 0, 1, 1], [], []>} : vector<16x16xbf16>, vector<16x78xbf16>, vector<16x78xf32> -> vector<16x78xf32>
    %134 = arith.addf %129, %133 : vector<16x78xf32>
    %c0_137 = arith.constant 0 : index
    %c12_138 = arith.constant 12 : index
    %135 = vector.load %arg8[%c0_137, %c12_138] : memref<16x100xbf16, #tpu.memory_space<vmem>>, vector<16x78xbf16>
    %c5_139 = arith.constant 5 : index
    %c0_140 = arith.constant 0 : index
    %c0_141 = arith.constant 0 : index
    %136 = vector.load %arg5[%c5_139, %c0_140, %c0_141] : memref<9x16x16xbf16, #tpu.memory_space<vmem>>, vector<1x16x16xbf16>
    %137 = vector.shape_cast %136 : vector<1x16x16xbf16> to vector<16x16xbf16>
    %cst_142 = arith.constant dense<0.000000e+00> : vector<16x78xf32>
    %138 = tpu.matmul %137, %135, %cst_142 {dimension_numbers = #tpu.dot_dimension_numbers<[1], [0], [0], [1], [0, 0, 1, 1], [], []>} : vector<16x16xbf16>, vector<16x78xbf16>, vector<16x78xf32> -> vector<16x78xf32>
    %139 = arith.addf %134, %138 : vector<16x78xf32>
    %c0_143 = arith.constant 0 : index
    %c20 = arith.constant 20 : index
    %140 = vector.load %arg8[%c0_143, %c20] : memref<16x100xbf16, #tpu.memory_space<vmem>>, vector<16x78xbf16>
    %c6_144 = arith.constant 6 : index
    %c0_145 = arith.constant 0 : index
    %c0_146 = arith.constant 0 : index
    %141 = vector.load %arg5[%c6_144, %c0_145, %c0_146] : memref<9x16x16xbf16, #tpu.memory_space<vmem>>, vector<1x16x16xbf16>
    %142 = vector.shape_cast %141 : vector<1x16x16xbf16> to vector<16x16xbf16>
    %cst_147 = arith.constant dense<0.000000e+00> : vector<16x78xf32>
    %143 = tpu.matmul %142, %140, %cst_147 {dimension_numbers = #tpu.dot_dimension_numbers<[1], [0], [0], [1], [0, 0, 1, 1], [], []>} : vector<16x16xbf16>, vector<16x78xbf16>, vector<16x78xf32> -> vector<16x78xf32>
    %144 = arith.addf %139, %143 : vector<16x78xf32>
    %c0_148 = arith.constant 0 : index
    %c21 = arith.constant 21 : index
    %145 = vector.load %arg8[%c0_148, %c21] : memref<16x100xbf16, #tpu.memory_space<vmem>>, vector<16x78xbf16>
    %c7_149 = arith.constant 7 : index
    %c0_150 = arith.constant 0 : index
    %c0_151 = arith.constant 0 : index
    %146 = vector.load %arg5[%c7_149, %c0_150, %c0_151] : memref<9x16x16xbf16, #tpu.memory_space<vmem>>, vector<1x16x16xbf16>
    %147 = vector.shape_cast %146 : vector<1x16x16xbf16> to vector<16x16xbf16>
    %cst_152 = arith.constant dense<0.000000e+00> : vector<16x78xf32>
    %148 = tpu.matmul %147, %145, %cst_152 {dimension_numbers = #tpu.dot_dimension_numbers<[1], [0], [0], [1], [0, 0, 1, 1], [], []>} : vector<16x16xbf16>, vector<16x78xbf16>, vector<16x78xf32> -> vector<16x78xf32>
    %149 = arith.addf %144, %148 : vector<16x78xf32>
    %c0_153 = arith.constant 0 : index
    %c22 = arith.constant 22 : index
    %150 = vector.load %arg8[%c0_153, %c22] : memref<16x100xbf16, #tpu.memory_space<vmem>>, vector<16x78xbf16>
    %c8_154 = arith.constant 8 : index
    %c0_155 = arith.constant 0 : index
    %c0_156 = arith.constant 0 : index
    %151 = vector.load %arg5[%c8_154, %c0_155, %c0_156] : memref<9x16x16xbf16, #tpu.memory_space<vmem>>, vector<1x16x16xbf16>
    %152 = vector.shape_cast %151 : vector<1x16x16xbf16> to vector<16x16xbf16>
    %cst_157 = arith.constant dense<0.000000e+00> : vector<16x78xf32>
    %153 = tpu.matmul %152, %150, %cst_157 {dimension_numbers = #tpu.dot_dimension_numbers<[1], [0], [0], [1], [0, 0, 1, 1], [], []>} : vector<16x16xbf16>, vector<16x78xbf16>, vector<16x78xf32> -> vector<16x78xf32>
    %154 = arith.addf %149, %153 : vector<16x78xf32>
    %c0_158 = arith.constant 0 : index
    %c0_159 = arith.constant 0 : index
    %155 = vector.load %arg6[%c0_158, %c0_159] : memref<16x1xf32, #tpu.memory_space<vmem>>, vector<16x1xf32>
    %156 = vector.broadcast %155 : vector<16x1xf32> to vector<16x78xf32>
    %157 = arith.addf %154, %156 : vector<16x78xf32>
    %158 = math.tanh %157 : vector<16x78xf32>
    %c0_160 = arith.constant 0 : index
    %c0_161 = arith.constant 0 : index
    %c0_162 = arith.constant 0 : index
    %159 = vector.load %arg7[%c0_160, %c0_161, %c0_162] : memref<1x16x78xf32, #tpu.memory_space<vmem>>, vector<1x16x78xf32>
    %160 = vector.shape_cast %159 : vector<1x16x78xf32> to vector<16x78xf32>
    %161 = vector.shape_cast %158 : vector<16x78xf32> to vector<1x16x78xf32>
    tpu.vector_store %arg7[%c0_160, %c0_161, %c0_162], %161 {strides = array<i32>} : memref<1x16x78xf32, #tpu.memory_space<vmem>>, vector<1x16x78xf32>,
    return
  }
  func.func @transform_0(%arg0: i32) -> (i32, i32, i32) {
    %c0_i32 = arith.constant 0 : i32
    %c0_i32_0 = arith.constant 0 : i32
    %c0_i32_1 = arith.constant 0 : i32
    return %arg0, %c0_i32, %c0_i32_0 : i32, i32, i32
  }
  func.func @transform_1(%arg0: i32) -> (i32, i32) {
    %c0_i32 = arith.constant 0 : i32
    %c0_i32_0 = arith.constant 0 : i32
    %c0_i32_1 = arith.constant 0 : i32
    return %c0_i32, %c0_i32_0 : i32, i32
  }
  func.func @transform_2(%arg0: i32) -> (i32, i32, i32) {
    %c0_i32 = arith.constant 0 : i32
    %c0_i32_0 = arith.constant 0 : i32
    %c0_i32_1 = arith.constant 0 : i32
    %c0_i32_2 = arith.constant 0 : i32
    return %c0_i32, %c0_i32_0, %c0_i32_1 : i32, i32, i32
  }
  func.func @transform_3(%arg0: i32) -> (i32, i32) {
    %c0_i32 = arith.constant 0 : i32
    %c0_i32_0 = arith.constant 0 : i32
    %c0_i32_1 = arith.constant 0 : i32
    return %c0_i32, %c0_i32_0 : i32, i32
  }
  func.func @transform_4(%arg0: i32) -> (i32, i32, i32) {
    %c0_i32 = arith.constant 0 : i32
    %c0_i32_0 = arith.constant 0 : i32
    %c0_i32_1 = arith.constant 0 : i32
    %c0_i32_2 = arith.constant 0 : i32
    return %c0_i32, %c0_i32_0, %c0_i32_1 : i32, i32, i32
  }
  func.func @transform_5(%arg0: i32) -> (i32, i32) {
    %c0_i32 = arith.constant 0 : i32
    %c0_i32_0 = arith.constant 0 : i32
    %c0_i32_1 = arith.constant 0 : i32
    return %c0_i32, %c0_i32_0 : i32, i32
  }
  func.func @transform_6(%arg0: i32) -> (i32, i32, i32) {
    %c0_i32 = arith.constant 0 : i32
    %c0_i32_0 = arith.constant 0 : i32
    %c0_i32_1 = arith.constant 0 : i32
    return %arg0, %c0_i32, %c0_i32_0 : i32, i32, i32
  }
}

</mosaic_0001>

<llo_original>
// kernel: tile.8
$region0: #{tile.8}
  #allocation0 [shape = 's32[1]{0}', space=sflag, size = 0x4, scoped, tag = 'scoped memory for tile.8']
  %s0 = inlined_call_operand.vmem [shape: f32[4], index: 0, kind: input, shape index: {}]
  %s1 = inlined_call_operand.vmem [shape: f32[4,4], index: 1, kind: output, shape index: {}]
  // Predicated region
  $region2: #{tile.8} parent=0 // pred_check
    _
  $region3: #{tile.8} parent=0 // pred_check_branch
    %3 = sbr.rel (0) target = $region5
  $region4: #{tile.8} parent=0 // pred_region
    _
  $region5: #{tile.8} parent=0 // pred_fallthru
    _
  %v4 = vld [vmem:[%s0] ss:$0 sm:$0xff]
  %5 = vst [vmem:[%s1] sm:$0xf] %v4

// kernel: tile.0
$region0: #{tile.0}
  %s0 = inlined_call_operand.vmem [shape: f32[4,4], index: 0, kind: input, shape index: {}]
  %s1 = inlined_call_operand.vmem [shape: f32[16,1], index: 1, kind: output, shape index: {}]
  $region1: #{tile.0} parent=0
    #allocation0 [shape = 'u8[4096]{0}', space=vmem, size = 0x1000, scoped, tag = 'scoped mem for input reshape']
    %s3 = sshll.u32 1, 4
    %s4 = ssub.s32 %s3, 1
    %v5 = vld [vmem:[%s0] sm:%s4]
    %6 = vst [vmem:[#allocation0] sm:%s4] %v5
    %v7 = vld [vmem:[#allocation0] sm:$0xf]
    %vm8 = vcmask 7168
    %9 = vst.msk [vmem:[%s1] ss:$4 sm:$0xf] %vm8, %v7
    %v10 = vld [vmem:[#allocation0] sm:$0xf]
    %11 = vrot.lane.b32.xlu0 %v10, 127
    %v12 = vpop.permute.xlu0 %11
    %vm13 = vcmask 7168
    %s14 = scalar_lea.vmem %s1, 1
    %15 = vst.msk [vmem:[%s14] ss:$4 sm:$0xf] %vm13, %v12
    %v16 = vld [vmem:[#allocation0] sm:$0xf]
    %17 = vrot.lane.b32.xlu0 %v16, 126
    %v18 = vpop.permute.xlu0 %17
    %vm19 = vcmask 7168
    %s20 = scalar_lea.vmem %s1, 2
    %21 = vst.msk [vmem:[%s20] ss:$4 sm:$0xf] %vm19, %v18
    %v22 = vld [vmem:[#allocation0] sm:$0xf]
    %23 = vrot.lane.b32.xlu0 %v22, 125
    %v24 = vpop.permute.xlu0 %23
    %vm25 = vcmask 7168
    %s26 = scalar_lea.vmem %s1, 3
    %27 = vst.msk [vmem:[%s26] ss:$4 sm:$0xf] %vm25, %v24

// kernel: outermost_block_forward.1
$region0: #{outermost_block_forward.1}
  #allocation0 [shape = 'u32[]', space=smem, size = 0x4, offset = 0x4, fixed_abs, tag = 'smem constant byte address 0x4 - core index']
  #allocation1 [shape = 'u32[144,128]{1,0:T(1,128)}', space=vmem, size = 0x12000, scoped, tag = 'internal scratch']
  #allocation2 [shape = 'bf16[16,100]{1,0:T(8,128)(2,1)}', space=vmem, size = 0x1000, scoped, tag = 'scratch operand']
  %s0 = inlined_call_operand.vmem [shape: bf16[2,16,90], index: 0, kind: input, shape index: {}]
  %s1 = inlined_call_operand.vmem [shape: f32[1,78], index: 1, kind: input, shape index: {}]
  %s2 = inlined_call_operand.vmem [shape: bf16[16,16,4], index: 2, kind: input, shape index: {}]
  %s3 = inlined_call_operand.vmem [shape: f32[16,1], index: 3, kind: input, shape index: {}]
  %s4 = inlined_call_operand.vmem [shape: bf16[9,16,16], index: 4, kind: input, shape index: {}]
  %s5 = inlined_call_operand.vmem [shape: f32[16,1], index: 5, kind: input, shape index: {}]
  %s6 = inlined_call_operand.vmem [shape: f32[2,16,78], index: 6, kind: output, shape index: {}]
  %s7 = sld [smem:[#allocation0]]
  $region57: #{outermost_block_forward.1} parent=0
    _
  %s9 = ssub.s32 1, %s7
  %s10 = scalar_select 0, %s9, %s7
  loop: start=0, step=1, limit=4
  $region2: #{outermost_block_forward.1} parent=0 // loop_pre_header
    _
  $region3: #{outermost_block_forward.1} parent=0 // loop_header
    %s12 = sphi 0, %s16
    %p13 = scmp.ge.s32.totalorder %s12, 4
    %s22 = sphi 0, %s24
    %s25 = sphi 0, %s22
    %s26 = sphi 0, %s25
    %s42 = sphi 0, %s26
    %s46 = sphi 0, %s46
    %s48 = sphi 0, %s46
    %s49 = sphi 0, %s48
    %s63 = sphi 0, %s49
    %s67 = sphi 0, %s67
    %s69 = sphi 0, %s67
    %s70 = sphi 0, %s69
    %s84 = sphi 0, %s70
    %s88 = sphi 0, %s88
    %s90 = sphi 0, %s88
    %s91 = sphi 0, %s90
    %s105 = sphi 0, %s91
    %s109 = sphi 0, %s109
    %s111 = sphi 0, %s109
    %s112 = sphi 0, %s111
    %s126 = sphi 0, %s112
    %s130 = sphi 0, %s130
    %s132 = sphi 0, %s130
    %s133 = sphi 0, %s132
    %s147 = sphi 0, %s133
    %s153 = sphi 0, %s155
    %s156 = sphi 0, %s153
    %s157 = sphi 0, %s156
    %s173 = sphi 0, %s157
  $region4: #{outermost_block_forward.1} parent=0 // loop_header_branch
    %15 = sbr.rel (%p13) target = $region8
  $region5: #{outermost_block_forward.1} parent=0 // loop_body
    %s17 = ssub.s32 %s12, 1
    %s18 = ssub.s32 %s12, 2
    %s19 = sadd.s32 %s12, 1
    %s20 = ssub.s32 %s12, %s19
    %p21 = scmp.eq.s32.totalorder %s20, 0
    %s23 = sadd.s32 %s22, 1
    %s24 = scalar_select %p21, %s22, %s23
    %p27 = pneg %p21
    %p28 = scmp.eq.s32.totalorder %s12, 1
    %p29 = por %p27, %p28
    %p30 = scmp.ne.s32.totalorder %s22, %s25
    %p31 = scmp.eq.s32.totalorder %s12, 0
    %p32 = por %p30, %p31
    %p33 = scmp.ne.s32.totalorder %s22, %s25
    %p34 = scmp.eq.s32.totalorder %s17, 1
    %p35 = por %p33, %p34
    %p36 = scmp.ne.s32.totalorder %s25, %s26
    %p37 = scmp.eq.s32.totalorder %s17, 0
    %p38 = por %p36, %p37
    %p39 = scmp.ne.s32.totalorder %s25, %s26
    %p40 = scmp.eq.s32.totalorder %s18, 1
    %p41 = por %p39, %p40
    %p43 = scmp.ne.s32.totalorder %s26, %s42
    %p44 = scmp.eq.s32.totalorder %s18, 0
    %p45 = por %p43, %p44
    %s47 = sadd.s32 %s46, 1
    %p50 = scmp.eq.s32.totalorder %s12, 1
    %p51 = scmp.ne.s32.totalorder %s46, %s48
    %p52 = scmp.eq.s32.totalorder %s12, 0
    %p53 = por %p51, %p52
    %p54 = scmp.ne.s32.totalorder %s46, %s48
    %p55 = scmp.eq.s32.totalorder %s17, 1
    %p56 = por %p54, %p55
    %p57 = scmp.ne.s32.totalorder %s48, %s49
    %p58 = scmp.eq.s32.totalorder %s17, 0
    %p59 = por %p57, %p58
    %p60 = scmp.ne.s32.totalorder %s48, %s49
    %p61 = scmp.eq.s32.totalorder %s18, 1
    %p62 = por %p60, %p61
    %p64 = scmp.ne.s32.totalorder %s49, %s63
    %p65 = scmp.eq.s32.totalorder %s18, 0
    %p66 = por %p64, %p65
    %s68 = sadd.s32 %s67, 1
    %p71 = scmp.eq.s32.totalorder %s12, 1
    %p72 = scmp.ne.s32.totalorder %s67, %s69
    %p73 = scmp.eq.s32.totalorder %s12, 0
    %p74 = por %p72, %p73
    %p75 = scmp.ne.s32.totalorder %s67, %s69
    %p76 = scmp.eq.s32.totalorder %s17, 1
    %p77 = por %p75, %p76
    %p78 = scmp.ne.s32.totalorder %s69, %s70
    %p79 = scmp.eq.s32.totalorder %s17, 0
    %p80 = por %p78, %p79
    %p81 = scmp.ne.s32.totalorder %s69, %s70
    %p82 = scmp.eq.s32.totalorder %s18, 1
    %p83 = por %p81, %p82
    %p85 = scmp.ne.s32.totalorder %s70, %s84
    %p86 = scmp.eq.s32.totalorder %s18, 0
    %p87 = por %p85, %p86
    %s89 = sadd.s32 %s88, 1
    %p92 = scmp.eq.s32.totalorder %s12, 1
    %p93 = scmp.ne.s32.totalorder %s88, %s90
    %p94 = scmp.eq.s32.totalorder %s12, 0
    %p95 = por %p93, %p94
    %p96 = scmp.ne.s32.totalorder %s88, %s90
    %p97 = scmp.eq.s32.totalorder %s17, 1
    %p98 = por %p96, %p97
    %p99 = scmp.ne.s32.totalorder %s90, %s91
    %p100 = scmp.eq.s32.totalorder %s17, 0
    %p101 = por %p99, %p100
    %p102 = scmp.ne.s32.totalorder %s90, %s91
    %p103 = scmp.eq.s32.totalorder %s18, 1
    %p104 = por %p102, %p103
    %p106 = scmp.ne.s32.totalorder %s91, %s105
    %p107 = scmp.eq.s32.totalorder %s18, 0
    %p108 = por %p106, %p107
    %s110 = sadd.s32 %s109, 1
    %p113 = scmp.eq.s32.totalorder %s12, 1
    %p114 = scmp.ne.s32.totalorder %s109, %s111
    %p115 = scmp.eq.s32.totalorder %s12, 0
    %p116 = por %p114, %p115
    %p117 = scmp.ne.s32.totalorder %s109, %s111
    %p118 = scmp.eq.s32.totalorder %s17, 1
    %p119 = por %p117, %p118
    %p120 = scmp.ne.s32.totalorder %s111, %s112
    %p121 = scmp.eq.s32.totalorder %s17, 0
    %p122 = por %p120, %p121
    %p123 = scmp.ne.s32.totalorder %s111, %s112
    %p124 = scmp.eq.s32.totalorder %s18, 1
    %p125 = por %p123, %p124
    %p127 = scmp.ne.s32.totalorder %s112, %s126
    %p128 = scmp.eq.s32.totalorder %s18, 0
    %p129 = por %p127, %p128
    %s131 = sadd.s32 %s130, 1
    %p134 = scmp.eq.s32.totalorder %s12, 1
    %p135 = scmp.ne.s32.totalorder %s130, %s132
    %p136 = scmp.eq.s32.totalorder %s12, 0
    %p137 = por %p135, %p136
    %p138 = scmp.ne.s32.totalorder %s130, %s132
    %p139 = scmp.eq.s32.totalorder %s17, 1
    %p140 = por %p138, %p139
    %p141 = scmp.ne.s32.totalorder %s132, %s133
    %p142 = scmp.eq.s32.totalorder %s17, 0
    %p143 = por %p141, %p142
    %p144 = scmp.ne.s32.totalorder %s132, %s133
    %p145 = scmp.eq.s32.totalorder %s18, 1
    %p146 = por %p144, %p145
    %p148 = scmp.ne.s32.totalorder %s133, %s147
    %p149 = scmp.eq.s32.totalorder %s18, 0
    %p150 = por %p148, %p149
    %s151 = ssub.s32 %s12, %s19
    %p152 = scmp.eq.s32.totalorder %s151, 0
    %s154 = sadd.s32 %s153, 1
    %s155 = scalar_select %p152, %s153, %s154
    %p158 = pneg %p152
    %p159 = scmp.eq.s32.totalorder %s12, 1
    %p160 = por %p158, %p159
    %p161 = scmp.ne.s32.totalorder %s153, %s156
    %p162 = scmp.eq.s32.totalorder %s12, 0
    %p163 = por %p161, %p162
    %p164 = scmp.ne.s32.totalorder %s153, %s156
    %p165 = scmp.eq.s32.totalorder %s17, 1
    %p166 = por %p164, %p165
    %p167 = scmp.ne.s32.totalorder %s156, %s157
    %p168 = scmp.eq.s32.totalorder %s17, 0
    %p169 = por %p167, %p168
    %p170 = scmp.ne.s32.totalorder %s156, %s157
    %p171 = scmp.eq.s32.totalorder %s18, 1
    %p172 = por %p170, %p171
    %p174 = scmp.ne.s32.totalorder %s157, %s173
    %p175 = scmp.eq.s32.totalorder %s18, 0
    %p176 = por %p174, %p175
    %p177 = scmp.le.s32.totalorder 1, %s12
    %p178 = scmp.lt.s32.totalorder %s12, 3
    %p179 = pnand %p177, %p178
    %p180 = pneg %p179
    // Predicated region
    $region9: #{outermost_block_forward.1} parent=5 // pred_check
      _
    $region10: #{outermost_block_forward.1} parent=5 // pred_check_branch
      %182 = sbr.rel (%p179) target = $region12
    $region11: #{outermost_block_forward.1} parent=5 // pred_region
      %s183 = ssub.s32 %s12, 1
      // Predicated region
      $region13: #{outermost_block_forward.1} parent=11 // pred_check
        %p184 = pneg %p59
      $region14: #{outermost_block_forward.1} parent=11 // pred_check_branch
        %186 = sbr.rel (%p184) target = $region16
      $region15: #{outermost_block_forward.1} parent=11 // pred_region
        _
      $region16: #{outermost_block_forward.1} parent=11 // pred_fallthru
        _
      // Predicated region
      $region17: #{outermost_block_forward.1} parent=11 // pred_check
        %p187 = pneg %p80
      $region18: #{outermost_block_forward.1} parent=11 // pred_check_branch
        %189 = sbr.rel (%p187) target = $region20
      $region19: #{outermost_block_forward.1} parent=11 // pred_region
        _
      $region20: #{outermost_block_forward.1} parent=11 // pred_fallthru
        _
      // Predicated region
      $region21: #{outermost_block_forward.1} parent=11 // pred_check
        %p190 = pneg %p101
      $region22: #{outermost_block_forward.1} parent=11 // pred_check_branch
        %192 = sbr.rel (%p190) target = $region24
      $region23: #{outermost_block_forward.1} parent=11 // pred_region
        _
      $region24: #{outermost_block_forward.1} parent=11 // pred_fallthru
        _
      // Predicated region
      $region25: #{outermost_block_forward.1} parent=11 // pred_check
        %p193 = pneg %p122
      $region26: #{outermost_block_forward.1} parent=11 // pred_check_branch
        %195 = sbr.rel (%p193) target = $region28
      $region27: #{outermost_block_forward.1} parent=11 // pred_region
        _
      $region28: #{outermost_block_forward.1} parent=11 // pred_fallthru
        _
      // Predicated region
      $region29: #{outermost_block_forward.1} parent=11 // pred_check
        %p196 = pneg %p143
      $region30: #{outermost_block_forward.1} parent=11 // pred_check_branch
        %198 = sbr.rel (%p196) target = $region32
      $region31: #{outermost_block_forward.1} parent=11 // pred_region
        _
      $region32: #{outermost_block_forward.1} parent=11 // pred_fallthru
        _
    $region12: #{outermost_block_forward.1} parent=5 // pred_fallthru
      _
    %p199 = scmp.lt.s32.totalorder %s12, 2
    // Predicated region
    $region33: #{outermost_block_forward.1} parent=5 // pred_check
      %p200 = pneg %p199
    $region34: #{outermost_block_forward.1} parent=5 // pred_check_branch
      %202 = sbr.rel (%p200) target = $region36
    $region35: #{outermost_block_forward.1} parent=5 // pred_region
      // Predicated region
      $region37: #{outermost_block_forward.1} parent=35 // pred_check
        %p203 = pneg %p32
      $region38: #{outermost_block_forward.1} parent=35 // pred_check_branch
        %205 = sbr.rel (%p203) target = $region40
      $region39: #{outermost_block_forward.1} parent=35 // pred_region
        %p206 = scmp.lt.s32.totalorder %s12, 1
        %s207 = scalar_select %p206, %s12, 1
        %s208 = smul.addr %s207, 2
        %s209 = smul.addr %s208, 4
        %s210 = scalar_lea.vmem %s0, %s209
      $region40: #{outermost_block_forward.1} parent=35 // pred_fallthru
        _
    $region36: #{outermost_block_forward.1} parent=5 // pred_fallthru
      _
    %p211 = scmp.le.s32.totalorder 1, %s12
    %p212 = scmp.lt.s32.totalorder %s12, 3
    %p213 = pnand %p211, %p212
    %p214 = pneg %p213
    // Predicated region
    $region41: #{outermost_block_forward.1} parent=5 // pred_check
      _
    $region42: #{outermost_block_forward.1} parent=5 // pred_check_branch
      %216 = sbr.rel (%p213) target = $region44
    $region43: #{outermost_block_forward.1} parent=5 // pred_region
      %s217 = ssub.s32 %s12, 1
      %p218 = scmp.lt.s32.totalorder %s17, 1
      %s219 = scalar_select %p218, %s17, 1
      %s220 = smul.addr %s219, 2
      %s221 = smul.addr %s220, 4
      %s222 = scalar_lea.vmem %s0, %s221
      %p223 = pneg %p38
      %p224 = pneg %p35
      %p225 = pneg %p59
      %p226 = pneg %p56
      %p227 = pneg %p80
      %p228 = pneg %p77
      %p229 = pneg %p101
      %p230 = pneg %p98
      %p231 = pneg %p122
      %p232 = pneg %p119
      %p233 = pneg %p143
      %p234 = pneg %p140
      %p235 = pneg %p169
      %p236 = pneg %p166
      %p237 = scmp.lt.s32.totalorder %s17, 1
      %s238 = scalar_select %p237, %s17, 1
      %s239 = smul.addr %s238, 2
      %s240 = smul.addr %s239, 8
      %s241 = scalar_lea.vmem %s6, %s240
      %p242 = scmp.lt.s32.totalorder %s17, 1
      %s243 = scalar_select %p242, %s17, 1
      %s244 = smul.addr %s243, 2
      %s245 = smul.addr %s244, 4
      %s246 = scalar_lea.vmem %s0, %s245
      %p247 = scmp.lt.s32.totalorder %s17, 1
      %s248 = scalar_select %p247, %s17, 1
      %s249 = smul.addr %s248, 2
      %s250 = smul.addr %s249, 8
      %s251 = scalar_lea.vmem %s6, %s250
      %v253 = vld [vmem:[%s246] sm:$0x3]
      %v254 = vld [vmem:[%s2] sm:$0xf]
      %v255 = vld [vmem:[%s2 + $0x4] sm:$0xf]
      %s256 = scalar_lea.vmem %s2, 8
      %v257 = vld [vmem:[%s256] sm:$0xf]
      %v258 = vld [vmem:[%s256 + $0x4] sm:$0xf]
      %v261 = vunpack.c.l.b16 %v257
      %v262 = vunpack.c.l.b16 %v258
      %v263 = vpack.c.b16 %v262, %v261
      %v265 = vunpack.c.l.b16 %v253
      %v266 = vpack.c.b16 %v265, %v265
      %267 = vrot.lane.b32.xlu0 %v266, 127
      %v268 = vpop.permute.xlu0 %267
      %vm269 = vcmask 31744
      %v271 = vsel %vm269, %v263, 0
      %vm273 = vcmask 1041408
      %v275 = vsel %vm273, %v268, 0
      %277 = vmatprep.subr.bf16.mxu0 0
      %278 = vmatpush1.bf16.msra.mxu0 0
      %279 = vmatprep.subr.bf16.mxu0 0
      %280 = vmatpush1.bf16.msra.mxu0 0
      %281 = vmatprep.subr.bf16.mxu0 0
      %282 = vmatpush1.bf16.msra.mxu0 0
      %283 = vmatprep.subr.bf16.mxu0 0
      %284 = vmatpush1.bf16.msra.mxu0 0
      %285 = vmatprep.subr.bf16.mxu0 0
      %286 = vmatpush1.bf16.msra.mxu0 0
      %287 = vmatprep.subr.bf16.mxu0 0
      %288 = vmatpush1.bf16.msra.mxu0 0
      %289 = vmatprep.subr.bf16.mxu0 0
      %290 = vmatpush1.bf16.msra.mxu0 0
      %291 = vmatprep.subr.bf16.mxu0 0
      %292 = vmatpush1.bf16.msra.mxu0 %v275
      %293 = vmatprep.subr.bf16.mxu0 0
      %294 = vmatpush2.bf16.msra.mxu0 0
      %295 = vmatprep.subr.bf16.mxu0 0
      %296 = vmatpush2.bf16.msra.mxu0 0
      %297 = vmatprep.subr.bf16.mxu0 0
      %298 = vmatpush2.bf16.msra.mxu0 0
      %299 = vmatprep.subr.bf16.mxu0 0
      %300 = vmatpush2.bf16.msra.mxu0 0
      %301 = vmatprep.subr.bf16.mxu0 0
      %302 = vmatpush2.bf16.msra.mxu0 0
      %303 = vmatprep.subr.bf16.mxu0 0
      %304 = vmatpush2.bf16.msra.mxu0 0
      %305 = vmatprep.subr.bf16.mxu0 0
      %306 = vmatpush2.bf16.msra.mxu0 0
      %307 = vmatprep.subr.bf16.mxu0 0
      %308 = vmatpush2.bf16.msra.mxu0 0
      %309 = vmatprep.mubr.bf16.mxu0 0
      %310 = vmatmul.mubr.bf16.gmra.mxu0 %v271
      %v311 = vpop.f32.mrf.mxu0
      %v312 = vadd.f32 0.0, %v311
      %v313 = vpop.f32.mrf.mxu0
      %v314 = vpop.f32.mrf.mxu0
      %v315 = vadd.f32 0.0, %v314
      %v316 = vpop.f32.mrf.mxu0
      %317 = vdwg.mxu0
      %v320 = vunpack.c.l.b16 %v254
      %v321 = vunpack.c.l.b16 %v255
      %v322 = vpack.c.b16 %v321, %v320
      %v324 = vsel %vm269, %v322, 0
      %v327 = vsel %vm273, %v253, 0
      %329 = vmatprep.subr.bf16.mxu0 0
      %330 = vmatpush1.bf16.msra.mxu0 0
      %331 = vmatprep.subr.bf16.mxu0 0
      %332 = vmatpush1.bf16.msra.mxu0 0
      %333 = vmatprep.subr.bf16.mxu0 0
      %334 = vmatpush1.bf16.msra.mxu0 0
      %335 = vmatprep.subr.bf16.mxu0 0
      %336 = vmatpush1.bf16.msra.mxu0 0
      %337 = vmatprep.subr.bf16.mxu0 0
      %338 = vmatpush1.bf16.msra.mxu0 0
      %339 = vmatprep.subr.bf16.mxu0 0
      %340 = vmatpush1.bf16.msra.mxu0 0
      %341 = vmatprep.subr.bf16.mxu0 0
      %342 = vmatpush1.bf16.msra.mxu0 0
      %343 = vmatprep.subr.bf16.mxu0 0
      %344 = vmatpush1.bf16.msra.mxu0 %v327
      %345 = vmatprep.subr.bf16.mxu0 0
      %346 = vmatpush2.bf16.msra.mxu0 0
      %347 = vmatprep.subr.bf16.mxu0 0
      %348 = vmatpush2.bf16.msra.mxu0 0
      %349 = vmatprep.subr.bf16.mxu0 0
      %350 = vmatpush2.bf16.msra.mxu0 0
      %351 = vmatprep.subr.bf16.mxu0 0
      %352 = vmatpush2.bf16.msra.mxu0 0
      %353 = vmatprep.subr.bf16.mxu0 0
      %354 = vmatpush2.bf16.msra.mxu0 0
      %355 = vmatprep.subr.bf16.mxu0 0
      %356 = vmatpush2.bf16.msra.mxu0 0
      %357 = vmatprep.subr.bf16.mxu0 0
      %358 = vmatpush2.bf16.msra.mxu0 0
      %359 = vmatprep.subr.bf16.mxu0 0
      %360 = vmatpush2.bf16.msra.mxu0 0
      %361 = vmatprep.mubr.bf16.mxu0 0
      %362 = vmatmul.mubr.bf16.gmra.mxu0 %v324
      %v363 = vpop.f32.mrf.mxu0
      %v364 = vadd.f32 %v312, %v363
      %v365 = vpop.f32.mrf.mxu0
      %v366 = vpop.f32.mrf.mxu0
      %v367 = vadd.f32 %v315, %v366
      %v368 = vpop.f32.mrf.mxu0
      %369 = vdwg.mxu0
      %s370 = scalar_lea.vmem %s2, 16
      %v371 = vld [vmem:[%s370] sm:$0xf]
      %v372 = vld [vmem:[%s370 + $0x4] sm:$0xf]
      %v375 = vunpack.c.l.b16 %v371
      %v376 = vunpack.c.l.b16 %v372
      %v377 = vpack.c.b16 %v376, %v375
      %378 = vrot.lane.b32.xlu0 %v266, 118
      %v379 = vpop.permute.xlu0 %378
      %v381 = vsel %vm269, %v377, 0
      %v384 = vsel %vm273, %v379, 0
      %386 = vmatprep.subr.bf16.mxu0 0
      %387 = vmatpush1.bf16.msra.mxu0 0
      %388 = vmatprep.subr.bf16.mxu0 0
      %389 = vmatpush1.bf16.msra.mxu0 0
      %390 = vmatprep.subr.bf16.mxu0 0
      %391 = vmatpush1.bf16.msra.mxu0 0
      %392 = vmatprep.subr.bf16.mxu0 0
      %393 = vmatpush1.bf16.msra.mxu0 0
      %394 = vmatprep.subr.bf16.mxu0 0
      %395 = vmatpush1.bf16.msra.mxu0 0
      %396 = vmatprep.subr.bf16.mxu0 0
      %397 = vmatpush1.bf16.msra.mxu0 0
      %398 = vmatprep.subr.bf16.mxu0 0
      %399 = vmatpush1.bf16.msra.mxu0 0
      %400 = vmatprep.subr.bf16.mxu0 0
      %401 = vmatpush1.bf16.msra.mxu0 %v384
      %402 = vmatprep.subr.bf16.mxu0 0
      %403 = vmatpush2.bf16.msra.mxu0 0
      %404 = vmatprep.subr.bf16.mxu0 0
      %405 = vmatpush2.bf16.msra.mxu0 0
      %406 = vmatprep.subr.bf16.mxu0 0
      %407 = vmatpush2.bf16.msra.mxu0 0
      %408 = vmatprep.subr.bf16.mxu0 0
      %409 = vmatpush2.bf16.msra.mxu0 0
      %410 = vmatprep.subr.bf16.mxu0 0
      %411 = vmatpush2.bf16.msra.mxu0 0
      %412 = vmatprep.subr.bf16.mxu0 0
      %413 = vmatpush2.bf16.msra.mxu0 0
      %414 = vmatprep.subr.bf16.mxu0 0
      %415 = vmatpush2.bf16.msra.mxu0 0
      %416 = vmatprep.subr.bf16.mxu0 0
      %417 = vmatpush2.bf16.msra.mxu0 0
      %418 = vmatprep.mubr.bf16.mxu0 0
      %419 = vmatmul.mubr.bf16.gmra.mxu0 %v381
      %v420 = vpop.f32.mrf.mxu0
      %v421 = vadd.f32 0.0, %v420
      %v422 = vpop.f32.mrf.mxu0
      %v423 = vpop.f32.mrf.mxu0
      %v424 = vadd.f32 0.0, %v423
      %v425 = vpop.f32.mrf.mxu0
      %426 = vdwg.mxu0
      %v427 = vadd.f32 %v364, %v421
      %v428 = vadd.f32 %v367, %v424
      %s429 = scalar_lea.vmem %s2, 24
      %v430 = vld [vmem:[%s429] sm:$0xf]
      %v431 = vld [vmem:[%s429 + $0x4] sm:$0xf]
      %v434 = vunpack.c.l.b16 %v430
      %v435 = vunpack.c.l.b16 %v431
      %v436 = vpack.c.b16 %v435, %v434
      %437 = vrot.lane.b32.xlu0 %v266, 117
      %v438 = vpop.permute.xlu0 %437
      %v440 = vsel %vm269, %v436, 0
      %v443 = vsel %vm273, %v438, 0
      %445 = vmatprep.subr.bf16.mxu0 0
      %446 = vmatpush1.bf16.msra.mxu0 0
      %447 = vmatprep.subr.bf16.mxu0 0
      %448 = vmatpush1.bf16.msra.mxu0 0
      %449 = vmatprep.subr.bf16.mxu0 0
      %450 = vmatpush1.bf16.msra.mxu0 0
      %451 = vmatprep.subr.bf16.mxu0 0
      %452 = vmatpush1.bf16.msra.mxu0 0
      %453 = vmatprep.subr.bf16.mxu0 0
      %454 = vmatpush1.bf16.msra.mxu0 0
      %455 = vmatprep.subr.bf16.mxu0 0
      %456 = vmatpush1.bf16.msra.mxu0 0
      %457 = vmatprep.subr.bf16.mxu0 0
      %458 = vmatpush1.bf16.msra.mxu0 0
      %459 = vmatprep.subr.bf16.mxu0 0
      %460 = vmatpush1.bf16.msra.mxu0 %v443
      %461 = vmatprep.subr.bf16.mxu0 0
      %462 = vmatpush2.bf16.msra.mxu0 0
      %463 = vmatprep.subr.bf16.mxu0 0
      %464 = vmatpush2.bf16.msra.mxu0 0
      %465 = vmatprep.subr.bf16.mxu0 0
      %466 = vmatpush2.bf16.msra.mxu0 0
      %467 = vmatprep.subr.bf16.mxu0 0
      %468 = vmatpush2.bf16.msra.mxu0 0
      %469 = vmatprep.subr.bf16.mxu0 0
      %470 = vmatpush2.bf16.msra.mxu0 0
      %471 = vmatprep.subr.bf16.mxu0 0
      %472 = vmatpush2.bf16.msra.mxu0 0
      %473 = vmatprep.subr.bf16.mxu0 0
      %474 = vmatpush2.bf16.msra.mxu0 0
      %475 = vmatprep.subr.bf16.mxu0 0
      %476 = vmatpush2.bf16.msra.mxu0 0
      %477 = vmatprep.mubr.bf16.mxu0 0
      %478 = vmatmul.mubr.bf16.gmra.mxu0 %v440
      %v479 = vpop.f32.mrf.mxu0
      %v480 = vadd.f32 0.0, %v479
      %v481 = vpop.f32.mrf.mxu0
      %v482 = vpop.f32.mrf.mxu0
      %v483 = vadd.f32 0.0, %v482
      %v484 = vpop.f32.mrf.mxu0
      %485 = vdwg.mxu0
      %v486 = vadd.f32 %v427, %v480
      %v487 = vadd.f32 %v428, %v483
      %v488 = vld [vmem:[%s246] sm:$0xc]
      %s489 = scalar_lea.vmem %s2, 32
      %v490 = vld [vmem:[%s489] sm:$0xf]
      %v491 = vld [vmem:[%s489 + $0x4] sm:$0xf]
      %v494 = vunpack.c.l.b16 %v490
      %v495 = vunpack.c.l.b16 %v491
      %v496 = vpack.c.b16 %v495, %v494
      %v498 = vunpack.c.l.b16 %v488
      %v499 = vpack.c.b16 %v498, %v498
      %v500 = vrot.slane %v499, 2
      %v502 = vsel %vm269, %v496, 0
      %v505 = vsel %vm273, %v500, 0
      %507 = vmatprep.subr.bf16.mxu0 0
      %508 = vmatpush1.bf16.msra.mxu0 0
      %509 = vmatprep.subr.bf16.mxu0 0
      %510 = vmatpush1.bf16.msra.mxu0 0
      %511 = vmatprep.subr.bf16.mxu0 0
      %512 = vmatpush1.bf16.msra.mxu0 0
      %513 = vmatprep.subr.bf16.mxu0 0
      %514 = vmatpush1.bf16.msra.mxu0 0
      %515 = vmatprep.subr.bf16.mxu0 0
      %516 = vmatpush1.bf16.msra.mxu0 0
      %517 = vmatprep.subr.bf16.mxu0 0
      %518 = vmatpush1.bf16.msra.mxu0 0
      %519 = vmatprep.subr.bf16.mxu0 0
      %520 = vmatpush1.bf16.msra.mxu0 0
      %521 = vmatprep.subr.bf16.mxu0 0
      %522 = vmatpush1.bf16.msra.mxu0 %v505
      %523 = vmatprep.subr.bf16.mxu0 0
      %524 = vmatpush2.bf16.msra.mxu0 0
      %525 = vmatprep.subr.bf16.mxu0 0
      %526 = vmatpush2.bf16.msra.mxu0 0
      %527 = vmatprep.subr.bf16.mxu0 0
      %528 = vmatpush2.bf16.msra.mxu0 0
      %529 = vmatprep.subr.bf16.mxu0 0
      %530 = vmatpush2.bf16.msra.mxu0 0
      %531 = vmatprep.subr.bf16.mxu0 0
      %532 = vmatpush2.bf16.msra.mxu0 0
      %533 = vmatprep.subr.bf16.mxu0 0
      %534 = vmatpush2.bf16.msra.mxu0 0
      %535 = vmatprep.subr.bf16.mxu0 0
      %536 = vmatpush2.bf16.msra.mxu0 0
      %537 = vmatprep.subr.bf16.mxu0 0
      %538 = vmatpush2.bf16.msra.mxu0 0
      %539 = vmatprep.mubr.bf16.mxu0 0
      %540 = vmatmul.mubr.bf16.gmra.mxu0 %v502
      %v541 = vpop.f32.mrf.mxu0
      %v542 = vadd.f32 0.0, %v541
      %v543 = vpop.f32.mrf.mxu0
      %v544 = vpop.f32.mrf.mxu0
      %v545 = vadd.f32 0.0, %v544
      %v546 = vpop.f32.mrf.mxu0
      %547 = vdwg.mxu0
      %v548 = vadd.f32 %v486, %v542
      %v549 = vadd.f32 %v487, %v545
      %s550 = scalar_lea.vmem %s2, 40
      %v551 = vld [vmem:[%s550] sm:$0xf]
      %v552 = vld [vmem:[%s550 + $0x4] sm:$0xf]
      %v555 = vunpack.c.l.b16 %v551
      %v556 = vunpack.c.l.b16 %v552
      %v557 = vpack.c.b16 %v556, %v555
      %558 = vrot.lane.b32.xlu0 %v500, 127
      %v559 = vpop.permute.xlu0 %558
      %v561 = vsel %vm269, %v557, 0
      %v564 = vsel %vm273, %v559, 0
      %566 = vmatprep.subr.bf16.mxu0 0
      %567 = vmatpush1.bf16.msra.mxu0 0
      %568 = vmatprep.subr.bf16.mxu0 0
      %569 = vmatpush1.bf16.msra.mxu0 0
      %570 = vmatprep.subr.bf16.mxu0 0
      %571 = vmatpush1.bf16.msra.mxu0 0
      %572 = vmatprep.subr.bf16.mxu0 0
      %573 = vmatpush1.bf16.msra.mxu0 0
      %574 = vmatprep.subr.bf16.mxu0 0
      %575 = vmatpush1.bf16.msra.mxu0 0
      %576 = vmatprep.subr.bf16.mxu0 0
      %577 = vmatpush1.bf16.msra.mxu0 0
      %578 = vmatprep.subr.bf16.mxu0 0
      %579 = vmatpush1.bf16.msra.mxu0 0
      %580 = vmatprep.subr.bf16.mxu0 0
      %581 = vmatpush1.bf16.msra.mxu0 %v564
      %582 = vmatprep.subr.bf16.mxu0 0
      %583 = vmatpush2.bf16.msra.mxu0 0
      %584 = vmatprep.subr.bf16.mxu0 0
      %585 = vmatpush2.bf16.msra.mxu0 0
      %586 = vmatprep.subr.bf16.mxu0 0
      %587 = vmatpush2.bf16.msra.mxu0 0
      %588 = vmatprep.subr.bf16.mxu0 0
      %589 = vmatpush2.bf16.msra.mxu0 0
      %590 = vmatprep.subr.bf16.mxu0 0
      %591 = vmatpush2.bf16.msra.mxu0 0
      %592 = vmatprep.subr.bf16.mxu0 0
      %593 = vmatpush2.bf16.msra.mxu0 0
      %594 = vmatprep.subr.bf16.mxu0 0
      %595 = vmatpush2.bf16.msra.mxu0 0
      %596 = vmatprep.subr.bf16.mxu0 0
      %597 = vmatpush2.bf16.msra.mxu0 0
      %598 = vmatprep.mubr.bf16.mxu0 0
      %599 = vmatmul.mubr.bf16.gmra.mxu0 %v561
      %v600 = vpop.f32.mrf.mxu0
      %v601 = vadd.f32 0.0, %v600
      %v602 = vpop.f32.mrf.mxu0
      %v603 = vpop.f32.mrf.mxu0
      %v604 = vadd.f32 0.0, %v603
      %v605 = vpop.f32.mrf.mxu0
      %606 = vdwg.mxu0
      %v607 = vadd.f32 %v548, %v601
      %v608 = vadd.f32 %v549, %v604
      %s609 = scalar_lea.vmem %s2, 48
      %v610 = vld [vmem:[%s609] sm:$0xf]
      %v611 = vld [vmem:[%s609 + $0x4] sm:$0xf]
      %v614 = vunpack.c.l.b16 %v610
      %v615 = vunpack.c.l.b16 %v611
      %v616 = vpack.c.b16 %v615, %v614
      %617 = vrot.lane.b32.xlu0 %v500, 118
      %v618 = vpop.permute.xlu0 %617
      %v620 = vsel %vm269, %v616, 0
      %v623 = vsel %vm273, %v618, 0
      %625 = vmatprep.subr.bf16.mxu0 0
      %626 = vmatpush1.bf16.msra.mxu0 0
      %627 = vmatprep.subr.bf16.mxu0 0
      %628 = vmatpush1.bf16.msra.mxu0 0
      %629 = vmatprep.subr.bf16.mxu0 0
      %630 = vmatpush1.bf16.msra.mxu0 0
      %631 = vmatprep.subr.bf16.mxu0 0
      %632 = vmatpush1.bf16.msra.mxu0 0
      %633 = vmatprep.subr.bf16.mxu0 0
      %634 = vmatpush1.bf16.msra.mxu0 0
      %635 = vmatprep.subr.bf16.mxu0 0
      %636 = vmatpush1.bf16.msra.mxu0 0
      %637 = vmatprep.subr.bf16.mxu0 0
      %638 = vmatpush1.bf16.msra.mxu0 0
      %639 = vmatprep.subr.bf16.mxu0 0
      %640 = vmatpush1.bf16.msra.mxu0 %v623
      %641 = vmatprep.subr.bf16.mxu0 0
      %642 = vmatpush2.bf16.msra.mxu0 0
      %643 = vmatprep.subr.bf16.mxu0 0
      %644 = vmatpush2.bf16.msra.mxu0 0
      %645 = vmatprep.subr.bf16.mxu0 0
      %646 = vmatpush2.bf16.msra.mxu0 0
      %647 = vmatprep.subr.bf16.mxu0 0
      %648 = vmatpush2.bf16.msra.mxu0 0
      %649 = vmatprep.subr.bf16.mxu0 0
      %650 = vmatpush2.bf16.msra.mxu0 0
      %651 = vmatprep.subr.bf16.mxu0 0
      %652 = vmatpush2.bf16.msra.mxu0 0
      %653 = vmatprep.subr.bf16.mxu0 0
      %654 = vmatpush2.bf16.msra.mxu0 0
      %655 = vmatprep.subr.bf16.mxu0 0
      %656 = vmatpush2.bf16.msra.mxu0 0
      %657 = vmatprep.mubr.bf16.mxu0 0
      %658 = vmatmul.mubr.bf16.gmra.mxu0 %v620
      %v659 = vpop.f32.mrf.mxu0
      %v660 = vadd.f32 0.0, %v659
      %v661 = vpop.f32.mrf.mxu0
      %v662 = vpop.f32.mrf.mxu0
      %v663 = vadd.f32 0.0, %v662
      %v664 = vpop.f32.mrf.mxu0
      %665 = vdwg.mxu0
      %v666 = vadd.f32 %v607, %v660
      %v667 = vadd.f32 %v608, %v663
      %s668 = scalar_lea.vmem %s2, 56
      %v669 = vld [vmem:[%s668] sm:$0xf]
      %v670 = vld [vmem:[%s668 + $0x4] sm:$0xf]
      %v673 = vunpack.c.l.b16 %v669
      %v674 = vunpack.c.l.b16 %v670
      %v675 = vpack.c.b16 %v674, %v673
      %676 = vrot.lane.b32.xlu0 %v500, 117
      %v677 = vpop.permute.xlu0 %676
      %v679 = vsel %vm269, %v675, 0
      %v682 = vsel %vm273, %v677, 0
      %684 = vmatprep.subr.bf16.mxu0 0
      %685 = vmatpush1.bf16.msra.mxu0 0
      %686 = vmatprep.subr.bf16.mxu0 0
      %687 = vmatpush1.bf16.msra.mxu0 0
      %688 = vmatprep.subr.bf16.mxu0 0
      %689 = vmatpush1.bf16.msra.mxu0 0
      %690 = vmatprep.subr.bf16.mxu0 0
      %691 = vmatpush1.bf16.msra.mxu0 0
      %692 = vmatprep.subr.bf16.mxu0 0
      %693 = vmatpush1.bf16.msra.mxu0 0
      %694 = vmatprep.subr.bf16.mxu0 0
      %695 = vmatpush1.bf16.msra.mxu0 0
      %696 = vmatprep.subr.bf16.mxu0 0
      %697 = vmatpush1.bf16.msra.mxu0 0
      %698 = vmatprep.subr.bf16.mxu0 0
      %699 = vmatpush1.bf16.msra.mxu0 %v682
      %700 = vmatprep.subr.bf16.mxu0 0
      %701 = vmatpush2.bf16.msra.mxu0 0
      %702 = vmatprep.subr.bf16.mxu0 0
      %703 = vmatpush2.bf16.msra.mxu0 0
      %704 = vmatprep.subr.bf16.mxu0 0
      %705 = vmatpush2.bf16.msra.mxu0 0
      %706 = vmatprep.subr.bf16.mxu0 0
      %707 = vmatpush2.bf16.msra.mxu0 0
      %708 = vmatprep.subr.bf16.mxu0 0
      %709 = vmatpush2.bf16.msra.mxu0 0
      %710 = vmatprep.subr.bf16.mxu0 0
      %711 = vmatpush2.bf16.msra.mxu0 0
      %712 = vmatprep.subr.bf16.mxu0 0
      %713 = vmatpush2.bf16.msra.mxu0 0
      %714 = vmatprep.subr.bf16.mxu0 0
      %715 = vmatpush2.bf16.msra.mxu0 0
      %716 = vmatprep.mubr.bf16.mxu0 0
      %717 = vmatmul.mubr.bf16.gmra.mxu0 %v679
      %v718 = vpop.f32.mrf.mxu0
      %v719 = vadd.f32 0.0, %v718
      %v720 = vpop.f32.mrf.mxu0
      %v721 = vpop.f32.mrf.mxu0
      %v722 = vadd.f32 0.0, %v721
      %v723 = vpop.f32.mrf.mxu0
      %724 = vdwg.mxu0
      %v725 = vadd.f32 %v666, %v719
      %v726 = vadd.f32 %v667, %v722
      %v727 = vld [vmem:[%s246 + $0x4] sm:$0x3]
      %s728 = scalar_lea.vmem %s2, 64
      %v729 = vld [vmem:[%s728] sm:$0xf]
      %v730 = vld [vmem:[%s728 + $0x4] sm:$0xf]
      %v733 = vunpack.c.l.b16 %v729
      %v734 = vunpack.c.l.b16 %v730
      %v735 = vpack.c.b16 %v734, %v733
      %v737 = vsel %vm269, %v735, 0
      %v740 = vsel %vm273, %v727, 0
      %742 = vmatprep.subr.bf16.mxu0 0
      %743 = vmatpush1.bf16.msra.mxu0 0
      %744 = vmatprep.subr.bf16.mxu0 0
      %745 = vmatpush1.bf16.msra.mxu0 0
      %746 = vmatprep.subr.bf16.mxu0 0
      %747 = vmatpush1.bf16.msra.mxu0 0
      %748 = vmatprep.subr.bf16.mxu0 0
      %749 = vmatpush1.bf16.msra.mxu0 0
      %750 = vmatprep.subr.bf16.mxu0 0
      %751 = vmatpush1.bf16.msra.mxu0 0
      %752 = vmatprep.subr.bf16.mxu0 0
      %753 = vmatpush1.bf16.msra.mxu0 0
      %754 = vmatprep.subr.bf16.mxu0 0
      %755 = vmatpush1.bf16.msra.mxu0 0
      %756 = vmatprep.subr.bf16.mxu0 0
      %757 = vmatpush1.bf16.msra.mxu0 %v740
      %758 = vmatprep.subr.bf16.mxu0 0
      %759 = vmatpush2.bf16.msra.mxu0 0
      %760 = vmatprep.subr.bf16.mxu0 0
      %761 = vmatpush2.bf16.msra.mxu0 0
      %762 = vmatprep.subr.bf16.mxu0 0
      %763 = vmatpush2.bf16.msra.mxu0 0
      %764 = vmatprep.subr.bf16.mxu0 0
      %765 = vmatpush2.bf16.msra.mxu0 0
      %766 = vmatprep.subr.bf16.mxu0 0
      %767 = vmatpush2.bf16.msra.mxu0 0
      %768 = vmatprep.subr.bf16.mxu0 0
      %769 = vmatpush2.bf16.msra.mxu0 0
      %770 = vmatprep.subr.bf16.mxu0 0
      %771 = vmatpush2.bf16.msra.mxu0 0
      %772 = vmatprep.subr.bf16.mxu0 0
      %773 = vmatpush2.bf16.msra.mxu0 0
      %774 = vmatprep.mubr.bf16.mxu0 0
      %775 = vmatmul.mubr.bf16.gmra.mxu0 %v737
      %v776 = vpop.f32.mrf.mxu0
      %v777 = vadd.f32 0.0, %v776
      %v778 = vpop.f32.mrf.mxu0
      %v779 = vpop.f32.mrf.mxu0
      %v780 = vadd.f32 0.0, %v779
      %v781 = vpop.f32.mrf.mxu0
      %782 = vdwg.mxu0
      %v783 = vadd.f32 %v725, %v777
      %v784 = vadd.f32 %v726, %v780
      %s785 = scalar_lea.vmem %s2, 72
      %v786 = vld [vmem:[%s785] sm:$0xf]
      %v787 = vld [vmem:[%s785 + $0x4] sm:$0xf]
      %v790 = vunpack.c.l.b16 %v786
      %v791 = vunpack.c.l.b16 %v787
      %v792 = vpack.c.b16 %v791, %v790
      %v794 = vunpack.c.l.b16 %v727
      %v795 = vpack.c.b16 %v794, %v794
      %796 = vrot.lane.b32.xlu0 %v795, 127
      %v797 = vpop.permute.xlu0 %796
      %v799 = vsel %vm269, %v792, 0
      %v802 = vsel %vm273, %v797, 0
      %804 = vmatprep.subr.bf16.mxu0 0
      %805 = vmatpush1.bf16.msra.mxu0 0
      %806 = vmatprep.subr.bf16.mxu0 0
      %807 = vmatpush1.bf16.msra.mxu0 0
      %808 = vmatprep.subr.bf16.mxu0 0
      %809 = vmatpush1.bf16.msra.mxu0 0
      %810 = vmatprep.subr.bf16.mxu0 0
      %811 = vmatpush1.bf16.msra.mxu0 0
      %812 = vmatprep.subr.bf16.mxu0 0
      %813 = vmatpush1.bf16.msra.mxu0 0
      %814 = vmatprep.subr.bf16.mxu0 0
      %815 = vmatpush1.bf16.msra.mxu0 0
      %816 = vmatprep.subr.bf16.mxu0 0
      %817 = vmatpush1.bf16.msra.mxu0 0
      %818 = vmatprep.subr.bf16.mxu0 0
      %819 = vmatpush1.bf16.msra.mxu0 %v802
      %820 = vmatprep.subr.bf16.mxu0 0
      %821 = vmatpush2.bf16.msra.mxu0 0
      %822 = vmatprep.subr.bf16.mxu0 0
      %823 = vmatpush2.bf16.msra.mxu0 0
      %824 = vmatprep.subr.bf16.mxu0 0
      %825 = vmatpush2.bf16.msra.mxu0 0
      %826 = vmatprep.subr.bf16.mxu0 0
      %827 = vmatpush2.bf16.msra.mxu0 0
      %828 = vmatprep.subr.bf16.mxu0 0
      %829 = vmatpush2.bf16.msra.mxu0 0
      %830 = vmatprep.subr.bf16.mxu0 0
      %831 = vmatpush2.bf16.msra.mxu0 0
      %832 = vmatprep.subr.bf16.mxu0 0
      %833 = vmatpush2.bf16.msra.mxu0 0
      %834 = vmatprep.subr.bf16.mxu0 0
      %835 = vmatpush2.bf16.msra.mxu0 0
      %836 = vmatprep.mubr.bf16.mxu0 0
      %837 = vmatmul.mubr.bf16.gmra.mxu0 %v799
      %v838 = vpop.f32.mrf.mxu0
      %v839 = vadd.f32 0.0, %v838
      %v840 = vpop.f32.mrf.mxu0
      %v841 = vpop.f32.mrf.mxu0
      %v842 = vadd.f32 0.0, %v841
      %v843 = vpop.f32.mrf.mxu0
      %844 = vdwg.mxu0
      %v845 = vadd.f32 %v783, %v839
      %v846 = vadd.f32 %v784, %v842
      %s847 = scalar_lea.vmem %s2, 80
      %v848 = vld [vmem:[%s847] sm:$0xf]
      %v849 = vld [vmem:[%s847 + $0x4] sm:$0xf]
      %v852 = vunpack.c.l.b16 %v848
      %v853 = vunpack.c.l.b16 %v849
      %v854 = vpack.c.b16 %v853, %v852
      %855 = vrot.lane.b32.xlu0 %v795, 118
      %v856 = vpop.permute.xlu0 %855
      %v858 = vsel %vm269, %v854, 0
      %v861 = vsel %vm273, %v856, 0
      %863 = vmatprep.subr.bf16.mxu0 0
      %864 = vmatpush1.bf16.msra.mxu0 0
      %865 = vmatprep.subr.bf16.mxu0 0
      %866 = vmatpush1.bf16.msra.mxu0 0
      %867 = vmatprep.subr.bf16.mxu0 0
      %868 = vmatpush1.bf16.msra.mxu0 0
      %869 = vmatprep.subr.bf16.mxu0 0
      %870 = vmatpush1.bf16.msra.mxu0 0
      %871 = vmatprep.subr.bf16.mxu0 0
      %872 = vmatpush1.bf16.msra.mxu0 0
      %873 = vmatprep.subr.bf16.mxu0 0
      %874 = vmatpush1.bf16.msra.mxu0 0
      %875 = vmatprep.subr.bf16.mxu0 0
      %876 = vmatpush1.bf16.msra.mxu0 0
      %877 = vmatprep.subr.bf16.mxu0 0
      %878 = vmatpush1.bf16.msra.mxu0 %v861
      %879 = vmatprep.subr.bf16.mxu0 0
      %880 = vmatpush2.bf16.msra.mxu0 0
      %881 = vmatprep.subr.bf16.mxu0 0
      %882 = vmatpush2.bf16.msra.mxu0 0
      %883 = vmatprep.subr.bf16.mxu0 0
      %884 = vmatpush2.bf16.msra.mxu0 0
      %885 = vmatprep.subr.bf16.mxu0 0
      %886 = vmatpush2.bf16.msra.mxu0 0
      %887 = vmatprep.subr.bf16.mxu0 0
      %888 = vmatpush2.bf16.msra.mxu0 0
      %889 = vmatprep.subr.bf16.mxu0 0
      %890 = vmatpush2.bf16.msra.mxu0 0
      %891 = vmatprep.subr.bf16.mxu0 0
      %892 = vmatpush2.bf16.msra.mxu0 0
      %893 = vmatprep.subr.bf16.mxu0 0
      %894 = vmatpush2.bf16.msra.mxu0 0
      %895 = vmatprep.mubr.bf16.mxu0 0
      %896 = vmatmul.mubr.bf16.gmra.mxu0 %v858
      %v897 = vpop.f32.mrf.mxu0
      %v898 = vadd.f32 0.0, %v897
      %v899 = vpop.f32.mrf.mxu0
      %v900 = vpop.f32.mrf.mxu0
      %v901 = vadd.f32 0.0, %v900
      %v902 = vpop.f32.mrf.mxu0
      %903 = vdwg.mxu0
      %v904 = vadd.f32 %v845, %v898
      %v905 = vadd.f32 %v846, %v901
      %s906 = scalar_lea.vmem %s2, 88
      %v907 = vld [vmem:[%s906] sm:$0xf]
      %v908 = vld [vmem:[%s906 + $0x4] sm:$0xf]
      %v911 = vunpack.c.l.b16 %v907
      %v912 = vunpack.c.l.b16 %v908
      %v913 = vpack.c.b16 %v912, %v911
      %914 = vrot.lane.b32.xlu0 %v795, 117
      %v915 = vpop.permute.xlu0 %914
      %v917 = vsel %vm269, %v913, 0
      %v920 = vsel %vm273, %v915, 0
      %922 = vmatprep.subr.bf16.mxu0 0
      %923 = vmatpush1.bf16.msra.mxu0 0
      %924 = vmatprep.subr.bf16.mxu0 0
      %925 = vmatpush1.bf16.msra.mxu0 0
      %926 = vmatprep.subr.bf16.mxu0 0
      %927 = vmatpush1.bf16.msra.mxu0 0
      %928 = vmatprep.subr.bf16.mxu0 0
      %929 = vmatpush1.bf16.msra.mxu0 0
      %930 = vmatprep.subr.bf16.mxu0 0
      %931 = vmatpush1.bf16.msra.mxu0 0
      %932 = vmatprep.subr.bf16.mxu0 0
      %933 = vmatpush1.bf16.msra.mxu0 0
      %934 = vmatprep.subr.bf16.mxu0 0
      %935 = vmatpush1.bf16.msra.mxu0 0
      %936 = vmatprep.subr.bf16.mxu0 0
      %937 = vmatpush1.bf16.msra.mxu0 %v920
      %938 = vmatprep.subr.bf16.mxu0 0
      %939 = vmatpush2.bf16.msra.mxu0 0
      %940 = vmatprep.subr.bf16.mxu0 0
      %941 = vmatpush2.bf16.msra.mxu0 0
      %942 = vmatprep.subr.bf16.mxu0 0
      %943 = vmatpush2.bf16.msra.mxu0 0
      %944 = vmatprep.subr.bf16.mxu0 0
      %945 = vmatpush2.bf16.msra.mxu0 0
      %946 = vmatprep.subr.bf16.mxu0 0
      %947 = vmatpush2.bf16.msra.mxu0 0
      %948 = vmatprep.subr.bf16.mxu0 0
      %949 = vmatpush2.bf16.msra.mxu0 0
      %950 = vmatprep.subr.bf16.mxu0 0
      %951 = vmatpush2.bf16.msra.mxu0 0
      %952 = vmatprep.subr.bf16.mxu0 0
      %953 = vmatpush2.bf16.msra.mxu0 0
      %954 = vmatprep.mubr.bf16.mxu0 0
      %955 = vmatmul.mubr.bf16.gmra.mxu0 %v917
      %v956 = vpop.f32.mrf.mxu0
      %v957 = vadd.f32 0.0, %v956
      %v958 = vpop.f32.mrf.mxu0
      %v959 = vpop.f32.mrf.mxu0
      %v960 = vadd.f32 0.0, %v959
      %v961 = vpop.f32.mrf.mxu0
      %962 = vdwg.mxu0
      %v963 = vadd.f32 %v904, %v957
      %v964 = vadd.f32 %v905, %v960
      %v965 = vld [vmem:[%s246 + $0x4] sm:$0xc]
      %s966 = scalar_lea.vmem %s2, 96
      %v967 = vld [vmem:[%s966] sm:$0xf]
      %v968 = vld [vmem:[%s966 + $0x4] sm:$0xf]
      %v971 = vunpack.c.l.b16 %v967
      %v972 = vunpack.c.l.b16 %v968
      %v973 = vpack.c.b16 %v972, %v971
      %v975 = vunpack.c.l.b16 %v965
      %v976 = vpack.c.b16 %v975, %v975
      %v977 = vrot.slane %v976, 2
      %v979 = vsel %vm269, %v973, 0
      %v982 = vsel %vm273, %v977, 0
      %984 = vmatprep.subr.bf16.mxu0 0
      %985 = vmatpush1.bf16.msra.mxu0 0
      %986 = vmatprep.subr.bf16.mxu0 0
      %987 = vmatpush1.bf16.msra.mxu0 0
      %988 = vmatprep.subr.bf16.mxu0 0
      %989 = vmatpush1.bf16.msra.mxu0 0
      %990 = vmatprep.subr.bf16.mxu0 0
      %991 = vmatpush1.bf16.msra.mxu0 0
      %992 = vmatprep.subr.bf16.mxu0 0
      %993 = vmatpush1.bf16.msra.mxu0 0
      %994 = vmatprep.subr.bf16.mxu0 0
      %995 = vmatpush1.bf16.msra.mxu0 0
      %996 = vmatprep.subr.bf16.mxu0 0
      %997 = vmatpush1.bf16.msra.mxu0 0
      %998 = vmatprep.subr.bf16.mxu0 0
      %999 = vmatpush1.bf16.msra.mxu0 %v982
      %1000 = vmatprep.subr.bf16.mxu0 0
      %1001 = vmatpush2.bf16.msra.mxu0 0
      %1002 = vmatprep.subr.bf16.mxu0 0
      %1003 = vmatpush2.bf16.msra.mxu0 0
      %1004 = vmatprep.subr.bf16.mxu0 0
      %1005 = vmatpush2.bf16.msra.mxu0 0
      %1006 = vmatprep.subr.bf16.mxu0 0
      %1007 = vmatpush2.bf16.msra.mxu0 0
      %1008 = vmatprep.subr.bf16.mxu0 0
      %1009 = vmatpush2.bf16.msra.mxu0 0
      %1010 = vmatprep.subr.bf16.mxu0 0
      %1011 = vmatpush2.bf16.msra.mxu0 0
      %1012 = vmatprep.subr.bf16.mxu0 0
      %1013 = vmatpush2.bf16.msra.mxu0 0
      %1014 = vmatprep.subr.bf16.mxu0 0
      %1015 = vmatpush2.bf16.msra.mxu0 0
      %1016 = vmatprep.mubr.bf16.mxu0 0
      %1017 = vmatmul.mubr.bf16.gmra.mxu0 %v979
      %v1018 = vpop.f32.mrf.mxu0
      %v1019 = vadd.f32 0.0, %v1018
      %v1020 = vpop.f32.mrf.mxu0
      %v1021 = vpop.f32.mrf.mxu0
      %v1022 = vadd.f32 0.0, %v1021
      %v1023 = vpop.f32.mrf.mxu0
      %1024 = vdwg.mxu0
      %v1025 = vadd.f32 %v963, %v1019
      %v1026 = vadd.f32 %v964, %v1022
      %s1027 = scalar_lea.vmem %s2, 104
      %v1028 = vld [vmem:[%s1027] sm:$0xf]
      %v1029 = vld [vmem:[%s1027 + $0x4] sm:$0xf]
      %v1032 = vunpack.c.l.b16 %v1028
      %v1033 = vunpack.c.l.b16 %v1029
      %v1034 = vpack.c.b16 %v1033, %v1032
      %1035 = vrot.lane.b32.xlu0 %v977, 127
      %v1036 = vpop.permute.xlu0 %1035
      %v1038 = vsel %vm269, %v1034, 0
      %v1041 = vsel %vm273, %v1036, 0
      %1043 = vmatprep.subr.bf16.mxu0 0
      %1044 = vmatpush1.bf16.msra.mxu0 0
      %1045 = vmatprep.subr.bf16.mxu0 0
      %1046 = vmatpush1.bf16.msra.mxu0 0
      %1047 = vmatprep.subr.bf16.mxu0 0
      %1048 = vmatpush1.bf16.msra.mxu0 0
      %1049 = vmatprep.subr.bf16.mxu0 0
      %1050 = vmatpush1.bf16.msra.mxu0 0
      %1051 = vmatprep.subr.bf16.mxu0 0
      %1052 = vmatpush1.bf16.msra.mxu0 0
      %1053 = vmatprep.subr.bf16.mxu0 0
      %1054 = vmatpush1.bf16.msra.mxu0 0
      %1055 = vmatprep.subr.bf16.mxu0 0
      %1056 = vmatpush1.bf16.msra.mxu0 0
      %1057 = vmatprep.subr.bf16.mxu0 0
      %1058 = vmatpush1.bf16.msra.mxu0 %v1041
      %1059 = vmatprep.subr.bf16.mxu0 0
      %1060 = vmatpush2.bf16.msra.mxu0 0
      %1061 = vmatprep.subr.bf16.mxu0 0
      %1062 = vmatpush2.bf16.msra.mxu0 0
      %1063 = vmatprep.subr.bf16.mxu0 0
      %1064 = vmatpush2.bf16.msra.mxu0 0
      %1065 = vmatprep.subr.bf16.mxu0 0
      %1066 = vmatpush2.bf16.msra.mxu0 0
      %1067 = vmatprep.subr.bf16.mxu0 0
      %1068 = vmatpush2.bf16.msra.mxu0 0
      %1069 = vmatprep.subr.bf16.mxu0 0
      %1070 = vmatpush2.bf16.msra.mxu0 0
      %1071 = vmatprep.subr.bf16.mxu0 0
      %1072 = vmatpush2.bf16.msra.mxu0 0
      %1073 = vmatprep.subr.bf16.mxu0 0
      %1074 = vmatpush2.bf16.msra.mxu0 0
      %1075 = vmatprep.mubr.bf16.mxu0 0
      %1076 = vmatmul.mubr.bf16.gmra.mxu0 %v1038
      %v1077 = vpop.f32.mrf.mxu0
      %v1078 = vadd.f32 0.0, %v1077
      %v1079 = vpop.f32.mrf.mxu0
      %v1080 = vpop.f32.mrf.mxu0
      %v1081 = vadd.f32 0.0, %v1080
      %v1082 = vpop.f32.mrf.mxu0
      %1083 = vdwg.mxu0
      %v1084 = vadd.f32 %v1025, %v1078
      %v1085 = vadd.f32 %v1026, %v1081
      %s1086 = scalar_lea.vmem %s2, 112
      %v1087 = vld [vmem:[%s1086] sm:$0xf]
      %v1088 = vld [vmem:[%s1086 + $0x4] sm:$0xf]
      %v1091 = vunpack.c.l.b16 %v1087
      %v1092 = vunpack.c.l.b16 %v1088
      %v1093 = vpack.c.b16 %v1092, %v1091
      %1094 = vrot.lane.b32.xlu0 %v977, 118
      %v1095 = vpop.permute.xlu0 %1094
      %v1097 = vsel %vm269, %v1093, 0
      %v1100 = vsel %vm273, %v1095, 0
      %1102 = vmatprep.subr.bf16.mxu0 0
      %1103 = vmatpush1.bf16.msra.mxu0 0
      %1104 = vmatprep.subr.bf16.mxu0 0
      %1105 = vmatpush1.bf16.msra.mxu0 0
      %1106 = vmatprep.subr.bf16.mxu0 0
      %1107 = vmatpush1.bf16.msra.mxu0 0
      %1108 = vmatprep.subr.bf16.mxu0 0
      %1109 = vmatpush1.bf16.msra.mxu0 0
      %1110 = vmatprep.subr.bf16.mxu0 0
      %1111 = vmatpush1.bf16.msra.mxu0 0
      %1112 = vmatprep.subr.bf16.mxu0 0
      %1113 = vmatpush1.bf16.msra.mxu0 0
      %1114 = vmatprep.subr.bf16.mxu0 0
      %1115 = vmatpush1.bf16.msra.mxu0 0
      %1116 = vmatprep.subr.bf16.mxu0 0
      %1117 = vmatpush1.bf16.msra.mxu0 %v1100
      %1118 = vmatprep.subr.bf16.mxu0 0
      %1119 = vmatpush2.bf16.msra.mxu0 0
      %1120 = vmatprep.subr.bf16.mxu0 0
      %1121 = vmatpush2.bf16.msra.mxu0 0
      %1122 = vmatprep.subr.bf16.mxu0 0
      %1123 = vmatpush2.bf16.msra.mxu0 0
      %1124 = vmatprep.subr.bf16.mxu0 0
      %1125 = vmatpush2.bf16.msra.mxu0 0
      %1126 = vmatprep.subr.bf16.mxu0 0
      %1127 = vmatpush2.bf16.msra.mxu0 0
      %1128 = vmatprep.subr.bf16.mxu0 0
      %1129 = vmatpush2.bf16.msra.mxu0 0
      %1130 = vmatprep.subr.bf16.mxu0 0
      %1131 = vmatpush2.bf16.msra.mxu0 0
      %1132 = vmatprep.subr.bf16.mxu0 0
      %1133 = vmatpush2.bf16.msra.mxu0 0
      %1134 = vmatprep.mubr.bf16.mxu0 0
      %1135 = vmatmul.mubr.bf16.gmra.mxu0 %v1097
      %v1136 = vpop.f32.mrf.mxu0
      %v1137 = vadd.f32 0.0, %v1136
      %v1138 = vpop.f32.mrf.mxu0
      %v1139 = vpop.f32.mrf.mxu0
      %v1140 = vadd.f32 0.0, %v1139
      %v1141 = vpop.f32.mrf.mxu0
      %1142 = vdwg.mxu0
      %v1143 = vadd.f32 %v1084, %v1137
      %v1144 = vadd.f32 %v1085, %v1140
      %s1145 = scalar_lea.vmem %s2, 120
      %v1146 = vld [vmem:[%s1145] sm:$0xf]
      %v1147 = vld [vmem:[%s1145 + $0x4] sm:$0xf]
      %v1150 = vunpack.c.l.b16 %v1146
      %v1151 = vunpack.c.l.b16 %v1147
      %v1152 = vpack.c.b16 %v1151, %v1150
      %1153 = vrot.lane.b32.xlu0 %v977, 117
      %v1154 = vpop.permute.xlu0 %1153
      %v1156 = vsel %vm269, %v1152, 0
      %v1159 = vsel %vm273, %v1154, 0
      %1161 = vmatprep.subr.bf16.mxu0 0
      %1162 = vmatpush1.bf16.msra.mxu0 0
      %1163 = vmatprep.subr.bf16.mxu0 0
      %1164 = vmatpush1.bf16.msra.mxu0 0
      %1165 = vmatprep.subr.bf16.mxu0 0
      %1166 = vmatpush1.bf16.msra.mxu0 0
      %1167 = vmatprep.subr.bf16.mxu0 0
      %1168 = vmatpush1.bf16.msra.mxu0 0
      %1169 = vmatprep.subr.bf16.mxu0 0
      %1170 = vmatpush1.bf16.msra.mxu0 0
      %1171 = vmatprep.subr.bf16.mxu0 0
      %1172 = vmatpush1.bf16.msra.mxu0 0
      %1173 = vmatprep.subr.bf16.mxu0 0
      %1174 = vmatpush1.bf16.msra.mxu0 0
      %1175 = vmatprep.subr.bf16.mxu0 0
      %1176 = vmatpush1.bf16.msra.mxu0 %v1159
      %1177 = vmatprep.subr.bf16.mxu0 0
      %1178 = vmatpush2.bf16.msra.mxu0 0
      %1179 = vmatprep.subr.bf16.mxu0 0
      %1180 = vmatpush2.bf16.msra.mxu0 0
      %1181 = vmatprep.subr.bf16.mxu0 0
      %1182 = vmatpush2.bf16.msra.mxu0 0
      %1183 = vmatprep.subr.bf16.mxu0 0
      %1184 = vmatpush2.bf16.msra.mxu0 0
      %1185 = vmatprep.subr.bf16.mxu0 0
      %1186 = vmatpush2.bf16.msra.mxu0 0
      %1187 = vmatprep.subr.bf16.mxu0 0
      %1188 = vmatpush2.bf16.msra.mxu0 0
      %1189 = vmatprep.subr.bf16.mxu0 0
      %1190 = vmatpush2.bf16.msra.mxu0 0
      %1191 = vmatprep.subr.bf16.mxu0 0
      %1192 = vmatpush2.bf16.msra.mxu0 0
      %1193 = vmatprep.mubr.bf16.mxu0 0
      %1194 = vmatmul.mubr.bf16.gmra.mxu0 %v1156
      %v1195 = vpop.f32.mrf.mxu0
      %v1196 = vadd.f32 0.0, %v1195
      %v1197 = vpop.f32.mrf.mxu0
      %v1198 = vpop.f32.mrf.mxu0
      %v1199 = vadd.f32 0.0, %v1198
      %v1200 = vpop.f32.mrf.mxu0
      %1201 = vdwg.mxu0
      %v1202 = vadd.f32 %v1143, %v1196
      %v1203 = vadd.f32 %v1144, %v1199
      %v1204 = vld [vmem:[%s3] sm:$0xff]
      %v1205 = vld [vmem:[%s3 + $0x8] sm:$0xff]
      %1207 = vset.pattern.permute.xlu0 0
      %1208 = vperm.xlu0 %1207, %v1204
      %v1209 = vpop.permute.xlu0 %1208
      %1212 = vset.pattern.permute.xlu0 0
      %1213 = vperm.xlu0 %1212, %v1205
      %v1214 = vpop.permute.xlu0 %1213
      %v1216 = vadd.f32 %v1202, %v1209
      %v1217 = vadd.f32 %v1203, %v1214
      %v1218 = vmax.f32 %v1216, 0.0
      %v1219 = vmax.f32 %v1217, 0.0
      %v1220 = vld [vmem:[%s1] sm:$0x1]
      %v1222 = vlaneseq
      %v1223 = vshrl.u32 %v1222, 7
      %v1224 = vsub.s32 0, %v1223
      %v1225 = vrot.slane %v1220, %v1224
      %v1227 = vmul.f32 %v1218, %v1225
      %v1228 = vmul.f32 %v1219, %v1225
      %vm1229 = vcmask 814080
      %1230 = vst.msk [vmem:[#allocation2] sm:$0xf] %vm1229, 0
      %1231 = vst.msk [vmem:[#allocation2 + $0x4] sm:$0xf] %vm1229, 0
      %v1232 = vpack.c.bf16 %v1228, %v1227
      %v1234 = vunpack.c.l.b16 %v1232
      %v1235 = vunpack.c.h.b16 %v1232
      %v1236 = vpack.c.b16 %v1234, %v1234
      %v1237 = vpack.c.b16 %v1235, %v1235
      %1238 = vrot.lane.b32.xlu0 %v1236, 11
      %v1239 = vpop.permute.xlu0 %1238
      %1240 = vrot.lane.b32.xlu0 %v1237, 11
      %v1241 = vpop.permute.xlu0 %1240
      %vm1244 = vcmask 724056
      %1245 = vst.msk [vmem:[#allocation2] sm:$0xf] %vm1244, %v1239
      %1246 = vst.msk [vmem:[#allocation2 + $0x4] sm:$0xf] %vm1244, %v1241
      %v1247 = vld [vmem:[#allocation2] sm:$0xf]
      %v1248 = vld [vmem:[#allocation2 + $0x4] sm:$0xf]
      %v1249 = vld [vmem:[%s4] sm:$0xf]
      %v1250 = vld [vmem:[%s4 + $0x4] sm:$0xf]
      %s1251 = scalar_lea.vmem %s4, 8
      %v1252 = vld [vmem:[%s1251] sm:$0xf]
      %v1253 = vld [vmem:[%s1251 + $0x4] sm:$0xf]
      %v1256 = vunpack.c.l.b16 %v1252
      %v1257 = vunpack.c.l.b16 %v1253
      %v1258 = vpack.c.b16 %v1257, %v1256
      %v1261 = vunpack.c.l.b16 %v1247
      %v1262 = vunpack.c.l.b16 %v1248
      %v1263 = vpack.c.b16 %v1262, %v1261
      %1264 = vrot.lane.b32.xlu0 %v1263, 127
      %v1265 = vpop.permute.xlu0 %1264
      %vm1267 = vcmask 130048
      %v1269 = vsel %vm1267, %v1258, 0
      %1271 = vmatprep.subr.bf16.mxu0 0
      %1272 = vmatpush1.bf16.msra.mxu0 0
      %1273 = vmatprep.subr.bf16.mxu0 0
      %1274 = vmatpush1.bf16.msra.mxu0 0
      %1275 = vmatprep.subr.bf16.mxu0 0
      %1276 = vmatpush1.bf16.msra.mxu0 0
      %1277 = vmatprep.subr.bf16.mxu0 0
      %1278 = vmatpush1.bf16.msra.mxu0 0
      %1279 = vmatprep.subr.bf16.mxu0 0
      %1280 = vmatpush1.bf16.msra.mxu0 0
      %1281 = vmatprep.subr.bf16.mxu0 0
      %1282 = vmatpush1.bf16.msra.mxu0 0
      %1283 = vmatprep.subr.bf16.mxu0 0
      %1284 = vmatpush1.bf16.msra.mxu0 0
      %1285 = vmatprep.subr.bf16.mxu0 0
      %1286 = vmatpush1.bf16.msra.mxu0 %v1265
      %1287 = vmatprep.subr.bf16.mxu0 0
      %1288 = vmatpush2.bf16.msra.mxu0 0
      %1289 = vmatprep.subr.bf16.mxu0 0
      %1290 = vmatpush2.bf16.msra.mxu0 0
      %1291 = vmatprep.subr.bf16.mxu0 0
      %1292 = vmatpush2.bf16.msra.mxu0 0
      %1293 = vmatprep.subr.bf16.mxu0 0
      %1294 = vmatpush2.bf16.msra.mxu0 0
      %1295 = vmatprep.subr.bf16.mxu0 0
      %1296 = vmatpush2.bf16.msra.mxu0 0
      %1297 = vmatprep.subr.bf16.mxu0 0
      %1298 = vmatpush2.bf16.msra.mxu0 0
      %1299 = vmatprep.subr.bf16.mxu0 0
      %1300 = vmatpush2.bf16.msra.mxu0 0
      %1301 = vmatprep.subr.bf16.mxu0 0
      %1302 = vmatpush2.bf16.msra.mxu0 0
      %1303 = vmatprep.mubr.bf16.mxu0 0
      %1304 = vmatmul.mubr.bf16.gmra.mxu0 %v1269
      %v1305 = vpop.f32.mrf.mxu0
      %v1306 = vadd.f32 0.0, %v1305
      %v1307 = vpop.f32.mrf.mxu0
      %v1308 = vpop.f32.mrf.mxu0
      %v1309 = vadd.f32 0.0, %v1308
      %v1310 = vpop.f32.mrf.mxu0
      %1311 = vdwg.mxu0
      %v1314 = vunpack.c.l.b16 %v1249
      %v1315 = vunpack.c.l.b16 %v1250
      %v1316 = vpack.c.b16 %v1315, %v1314
      %v1319 = vsel %vm1267, %v1316, 0
      %1321 = vmatprep.subr.bf16.mxu0 0
      %1322 = vmatpush1.bf16.msra.mxu0 0
      %1323 = vmatprep.subr.bf16.mxu0 0
      %1324 = vmatpush1.bf16.msra.mxu0 0
      %1325 = vmatprep.subr.bf16.mxu0 0
      %1326 = vmatpush1.bf16.msra.mxu0 0
      %1327 = vmatprep.subr.bf16.mxu0 0
      %1328 = vmatpush1.bf16.msra.mxu0 0
      %1329 = vmatprep.subr.bf16.mxu0 0
      %1330 = vmatpush1.bf16.msra.mxu0 0
      %1331 = vmatprep.subr.bf16.mxu0 0
      %1332 = vmatpush1.bf16.msra.mxu0 0
      %1333 = vmatprep.subr.bf16.mxu0 0
      %1334 = vmatpush1.bf16.msra.mxu0 0
      %1335 = vmatprep.subr.bf16.mxu0 0
      %1336 = vmatpush1.bf16.msra.mxu0 %v1263
      %1337 = vmatprep.subr.bf16.mxu0 0
      %1338 = vmatpush2.bf16.msra.mxu0 0
      %1339 = vmatprep.subr.bf16.mxu0 0
      %1340 = vmatpush2.bf16.msra.mxu0 0
      %1341 = vmatprep.subr.bf16.mxu0 0
      %1342 = vmatpush2.bf16.msra.mxu0 0
      %1343 = vmatprep.subr.bf16.mxu0 0
      %1344 = vmatpush2.bf16.msra.mxu0 0
      %1345 = vmatprep.subr.bf16.mxu0 0
      %1346 = vmatpush2.bf16.msra.mxu0 0
      %1347 = vmatprep.subr.bf16.mxu0 0
      %1348 = vmatpush2.bf16.msra.mxu0 0
      %1349 = vmatprep.subr.bf16.mxu0 0
      %1350 = vmatpush2.bf16.msra.mxu0 0
      %1351 = vmatprep.subr.bf16.mxu0 0
      %1352 = vmatpush2.bf16.msra.mxu0 0
      %1353 = vmatprep.mubr.bf16.mxu0 0
      %1354 = vmatmul.mubr.bf16.gmra.mxu0 %v1319
      %v1355 = vpop.f32.mrf.mxu0
      %v1356 = vadd.f32 %v1306, %v1355
      %v1357 = vpop.f32.mrf.mxu0
      %v1358 = vpop.f32.mrf.mxu0
      %v1359 = vadd.f32 %v1309, %v1358
      %v1360 = vpop.f32.mrf.mxu0
      %1361 = vdwg.mxu0
      %s1362 = scalar_lea.vmem %s4, 16
      %v1363 = vld [vmem:[%s1362] sm:$0xf]
      %v1364 = vld [vmem:[%s1362 + $0x4] sm:$0xf]
      %v1367 = vunpack.c.l.b16 %v1363
      %v1368 = vunpack.c.l.b16 %v1364
      %v1369 = vpack.c.b16 %v1368, %v1367
      %1370 = vrot.lane.b32.xlu0 %v1263, 126
      %v1371 = vpop.permute.xlu0 %1370
      %v1374 = vsel %vm1267, %v1369, 0
      %1376 = vmatprep.subr.bf16.mxu0 0
      %1377 = vmatpush1.bf16.msra.mxu0 0
      %1378 = vmatprep.subr.bf16.mxu0 0
      %1379 = vmatpush1.bf16.msra.mxu0 0
      %1380 = vmatprep.subr.bf16.mxu0 0
      %1381 = vmatpush1.bf16.msra.mxu0 0
      %1382 = vmatprep.subr.bf16.mxu0 0
      %1383 = vmatpush1.bf16.msra.mxu0 0
      %1384 = vmatprep.subr.bf16.mxu0 0
      %1385 = vmatpush1.bf16.msra.mxu0 0
      %1386 = vmatprep.subr.bf16.mxu0 0
      %1387 = vmatpush1.bf16.msra.mxu0 0
      %1388 = vmatprep.subr.bf16.mxu0 0
      %1389 = vmatpush1.bf16.msra.mxu0 0
      %1390 = vmatprep.subr.bf16.mxu0 0
      %1391 = vmatpush1.bf16.msra.mxu0 %v1371
      %1392 = vmatprep.subr.bf16.mxu0 0
      %1393 = vmatpush2.bf16.msra.mxu0 0
      %1394 = vmatprep.subr.bf16.mxu0 0
      %1395 = vmatpush2.bf16.msra.mxu0 0
      %1396 = vmatprep.subr.bf16.mxu0 0
      %1397 = vmatpush2.bf16.msra.mxu0 0
      %1398 = vmatprep.subr.bf16.mxu0 0
      %1399 = vmatpush2.bf16.msra.mxu0 0
      %1400 = vmatprep.subr.bf16.mxu0 0
      %1401 = vmatpush2.bf16.msra.mxu0 0
      %1402 = vmatprep.subr.bf16.mxu0 0
      %1403 = vmatpush2.bf16.msra.mxu0 0
      %1404 = vmatprep.subr.bf16.mxu0 0
      %1405 = vmatpush2.bf16.msra.mxu0 0
      %1406 = vmatprep.subr.bf16.mxu0 0
      %1407 = vmatpush2.bf16.msra.mxu0 0
      %1408 = vmatprep.mubr.bf16.mxu0 0
      %1409 = vmatmul.mubr.bf16.gmra.mxu0 %v1374
      %v1410 = vpop.f32.mrf.mxu0
      %v1411 = vadd.f32 0.0, %v1410
      %v1412 = vpop.f32.mrf.mxu0
      %v1413 = vpop.f32.mrf.mxu0
      %v1414 = vadd.f32 0.0, %v1413
      %v1415 = vpop.f32.mrf.mxu0
      %1416 = vdwg.mxu0
      %v1417 = vadd.f32 %v1356, %v1411
      %v1418 = vadd.f32 %v1359, %v1414
      %s1419 = scalar_lea.vmem %s4, 24
      %v1420 = vld [vmem:[%s1419] sm:$0xf]
      %v1421 = vld [vmem:[%s1419 + $0x4] sm:$0xf]
      %v1424 = vunpack.c.l.b16 %v1420
      %v1425 = vunpack.c.l.b16 %v1421
      %v1426 = vpack.c.b16 %v1425, %v1424
      %1427 = vrot.lane.b32.xlu0 %v1263, 118
      %v1428 = vpop.permute.xlu0 %1427
      %v1431 = vsel %vm1267, %v1426, 0
      %1433 = vmatprep.subr.bf16.mxu0 0
      %1434 = vmatpush1.bf16.msra.mxu0 0
      %1435 = vmatprep.subr.bf16.mxu0 0
      %1436 = vmatpush1.bf16.msra.mxu0 0
      %1437 = vmatprep.subr.bf16.mxu0 0
      %1438 = vmatpush1.bf16.msra.mxu0 0
      %1439 = vmatprep.subr.bf16.mxu0 0
      %1440 = vmatpush1.bf16.msra.mxu0 0
      %1441 = vmatprep.subr.bf16.mxu0 0
      %1442 = vmatpush1.bf16.msra.mxu0 0
      %1443 = vmatprep.subr.bf16.mxu0 0
      %1444 = vmatpush1.bf16.msra.mxu0 0
      %1445 = vmatprep.subr.bf16.mxu0 0
      %1446 = vmatpush1.bf16.msra.mxu0 0
      %1447 = vmatprep.subr.bf16.mxu0 0
      %1448 = vmatpush1.bf16.msra.mxu0 %v1428
      %1449 = vmatprep.subr.bf16.mxu0 0
      %1450 = vmatpush2.bf16.msra.mxu0 0
      %1451 = vmatprep.subr.bf16.mxu0 0
      %1452 = vmatpush2.bf16.msra.mxu0 0
      %1453 = vmatprep.subr.bf16.mxu0 0
      %1454 = vmatpush2.bf16.msra.mxu0 0
      %1455 = vmatprep.subr.bf16.mxu0 0
      %1456 = vmatpush2.bf16.msra.mxu0 0
      %1457 = vmatprep.subr.bf16.mxu0 0
      %1458 = vmatpush2.bf16.msra.mxu0 0
      %1459 = vmatprep.subr.bf16.mxu0 0
      %1460 = vmatpush2.bf16.msra.mxu0 0
      %1461 = vmatprep.subr.bf16.mxu0 0
      %1462 = vmatpush2.bf16.msra.mxu0 0
      %1463 = vmatprep.subr.bf16.mxu0 0
      %1464 = vmatpush2.bf16.msra.mxu0 0
      %1465 = vmatprep.mubr.bf16.mxu0 0
      %1466 = vmatmul.mubr.bf16.gmra.mxu0 %v1431
      %v1467 = vpop.f32.mrf.mxu0
      %v1468 = vadd.f32 0.0, %v1467
      %v1469 = vpop.f32.mrf.mxu0
      %v1470 = vpop.f32.mrf.mxu0
      %v1471 = vadd.f32 0.0, %v1470
      %v1472 = vpop.f32.mrf.mxu0
      %1473 = vdwg.mxu0
      %v1474 = vadd.f32 %v1417, %v1468
      %v1475 = vadd.f32 %v1418, %v1471
      %s1476 = scalar_lea.vmem %s4, 32
      %v1477 = vld [vmem:[%s1476] sm:$0xf]
      %v1478 = vld [vmem:[%s1476 + $0x4] sm:$0xf]
      %v1481 = vunpack.c.l.b16 %v1477
      %v1482 = vunpack.c.l.b16 %v1478
      %v1483 = vpack.c.b16 %v1482, %v1481
      %1484 = vrot.lane.b32.xlu0 %v1263, 117
      %v1485 = vpop.permute.xlu0 %1484
      %v1488 = vsel %vm1267, %v1483, 0
      %1490 = vmatprep.subr.bf16.mxu0 0
      %1491 = vmatpush1.bf16.msra.mxu0 0
      %1492 = vmatprep.subr.bf16.mxu0 0
      %1493 = vmatpush1.bf16.msra.mxu0 0
      %1494 = vmatprep.subr.bf16.mxu0 0
      %1495 = vmatpush1.bf16.msra.mxu0 0
      %1496 = vmatprep.subr.bf16.mxu0 0
      %1497 = vmatpush1.bf16.msra.mxu0 0
      %1498 = vmatprep.subr.bf16.mxu0 0
      %1499 = vmatpush1.bf16.msra.mxu0 0
      %1500 = vmatprep.subr.bf16.mxu0 0
      %1501 = vmatpush1.bf16.msra.mxu0 0
      %1502 = vmatprep.subr.bf16.mxu0 0
      %1503 = vmatpush1.bf16.msra.mxu0 0
      %1504 = vmatprep.subr.bf16.mxu0 0
      %1505 = vmatpush1.bf16.msra.mxu0 %v1485
      %1506 = vmatprep.subr.bf16.mxu0 0
      %1507 = vmatpush2.bf16.msra.mxu0 0
      %1508 = vmatprep.subr.bf16.mxu0 0
      %1509 = vmatpush2.bf16.msra.mxu0 0
      %1510 = vmatprep.subr.bf16.mxu0 0
      %1511 = vmatpush2.bf16.msra.mxu0 0
      %1512 = vmatprep.subr.bf16.mxu0 0
      %1513 = vmatpush2.bf16.msra.mxu0 0
      %1514 = vmatprep.subr.bf16.mxu0 0
      %1515 = vmatpush2.bf16.msra.mxu0 0
      %1516 = vmatprep.subr.bf16.mxu0 0
      %1517 = vmatpush2.bf16.msra.mxu0 0
      %1518 = vmatprep.subr.bf16.mxu0 0
      %1519 = vmatpush2.bf16.msra.mxu0 0
      %1520 = vmatprep.subr.bf16.mxu0 0
      %1521 = vmatpush2.bf16.msra.mxu0 0
      %1522 = vmatprep.mubr.bf16.mxu0 0
      %1523 = vmatmul.mubr.bf16.gmra.mxu0 %v1488
      %v1524 = vpop.f32.mrf.mxu0
      %v1525 = vadd.f32 0.0, %v1524
      %v1526 = vpop.f32.mrf.mxu0
      %v1527 = vpop.f32.mrf.mxu0
      %v1528 = vadd.f32 0.0, %v1527
      %v1529 = vpop.f32.mrf.mxu0
      %1530 = vdwg.mxu0
      %v1531 = vadd.f32 %v1474, %v1525
      %v1532 = vadd.f32 %v1475, %v1528
      %s1533 = scalar_lea.vmem %s4, 40
      %v1534 = vld [vmem:[%s1533] sm:$0xf]
      %v1535 = vld [vmem:[%s1533 + $0x4] sm:$0xf]
      %v1538 = vunpack.c.l.b16 %v1534
      %v1539 = vunpack.c.l.b16 %v1535
      %v1540 = vpack.c.b16 %v1539, %v1538
      %1541 = vrot.lane.b32.xlu0 %v1263, 116
      %v1542 = vpop.permute.xlu0 %1541
      %v1545 = vsel %vm1267, %v1540, 0
      %1547 = vmatprep.subr.bf16.mxu0 0
      %1548 = vmatpush1.bf16.msra.mxu0 0
      %1549 = vmatprep.subr.bf16.mxu0 0
      %1550 = vmatpush1.bf16.msra.mxu0 0
      %1551 = vmatprep.subr.bf16.mxu0 0
      %1552 = vmatpush1.bf16.msra.mxu0 0
      %1553 = vmatprep.subr.bf16.mxu0 0
      %1554 = vmatpush1.bf16.msra.mxu0 0
      %1555 = vmatprep.subr.bf16.mxu0 0
      %1556 = vmatpush1.bf16.msra.mxu0 0
      %1557 = vmatprep.subr.bf16.mxu0 0
      %1558 = vmatpush1.bf16.msra.mxu0 0
      %1559 = vmatprep.subr.bf16.mxu0 0
      %1560 = vmatpush1.bf16.msra.mxu0 0
      %1561 = vmatprep.subr.bf16.mxu0 0
      %1562 = vmatpush1.bf16.msra.mxu0 %v1542
      %1563 = vmatprep.subr.bf16.mxu0 0
      %1564 = vmatpush2.bf16.msra.mxu0 0
      %1565 = vmatprep.subr.bf16.mxu0 0
      %1566 = vmatpush2.bf16.msra.mxu0 0
      %1567 = vmatprep.subr.bf16.mxu0 0
      %1568 = vmatpush2.bf16.msra.mxu0 0
      %1569 = vmatprep.subr.bf16.mxu0 0
      %1570 = vmatpush2.bf16.msra.mxu0 0
      %1571 = vmatprep.subr.bf16.mxu0 0
      %1572 = vmatpush2.bf16.msra.mxu0 0
      %1573 = vmatprep.subr.bf16.mxu0 0
      %1574 = vmatpush2.bf16.msra.mxu0 0
      %1575 = vmatprep.subr.bf16.mxu0 0
      %1576 = vmatpush2.bf16.msra.mxu0 0
      %1577 = vmatprep.subr.bf16.mxu0 0
      %1578 = vmatpush2.bf16.msra.mxu0 0
      %1579 = vmatprep.mubr.bf16.mxu0 0
      %1580 = vmatmul.mubr.bf16.gmra.mxu0 %v1545
      %v1581 = vpop.f32.mrf.mxu0
      %v1582 = vadd.f32 0.0, %v1581
      %v1583 = vpop.f32.mrf.mxu0
      %v1584 = vpop.f32.mrf.mxu0
      %v1585 = vadd.f32 0.0, %v1584
      %v1586 = vpop.f32.mrf.mxu0
      %1587 = vdwg.mxu0
      %v1588 = vadd.f32 %v1531, %v1582
      %v1589 = vadd.f32 %v1532, %v1585
      %s1590 = scalar_lea.vmem %s4, 48
      %v1591 = vld [vmem:[%s1590] sm:$0xf]
      %v1592 = vld [vmem:[%s1590 + $0x4] sm:$0xf]
      %v1595 = vunpack.c.l.b16 %v1591
      %v1596 = vunpack.c.l.b16 %v1592
      %v1597 = vpack.c.b16 %v1596, %v1595
      %1598 = vrot.lane.b32.xlu0 %v1263, 108
      %v1599 = vpop.permute.xlu0 %1598
      %v1602 = vsel %vm1267, %v1597, 0
      %1604 = vmatprep.subr.bf16.mxu0 0
      %1605 = vmatpush1.bf16.msra.mxu0 0
      %1606 = vmatprep.subr.bf16.mxu0 0
      %1607 = vmatpush1.bf16.msra.mxu0 0
      %1608 = vmatprep.subr.bf16.mxu0 0
      %1609 = vmatpush1.bf16.msra.mxu0 0
      %1610 = vmatprep.subr.bf16.mxu0 0
      %1611 = vmatpush1.bf16.msra.mxu0 0
      %1612 = vmatprep.subr.bf16.mxu0 0
      %1613 = vmatpush1.bf16.msra.mxu0 0
      %1614 = vmatprep.subr.bf16.mxu0 0
      %1615 = vmatpush1.bf16.msra.mxu0 0
      %1616 = vmatprep.subr.bf16.mxu0 0
      %1617 = vmatpush1.bf16.msra.mxu0 0
      %1618 = vmatprep.subr.bf16.mxu0 0
      %1619 = vmatpush1.bf16.msra.mxu0 %v1599
      %1620 = vmatprep.subr.bf16.mxu0 0
      %1621 = vmatpush2.bf16.msra.mxu0 0
      %1622 = vmatprep.subr.bf16.mxu0 0
      %1623 = vmatpush2.bf16.msra.mxu0 0
      %1624 = vmatprep.subr.bf16.mxu0 0
      %1625 = vmatpush2.bf16.msra.mxu0 0
      %1626 = vmatprep.subr.bf16.mxu0 0
      %1627 = vmatpush2.bf16.msra.mxu0 0
      %1628 = vmatprep.subr.bf16.mxu0 0
      %1629 = vmatpush2.bf16.msra.mxu0 0
      %1630 = vmatprep.subr.bf16.mxu0 0
      %1631 = vmatpush2.bf16.msra.mxu0 0
      %1632 = vmatprep.subr.bf16.mxu0 0
      %1633 = vmatpush2.bf16.msra.mxu0 0
      %1634 = vmatprep.subr.bf16.mxu0 0
      %1635 = vmatpush2.bf16.msra.mxu0 0
      %1636 = vmatprep.mubr.bf16.mxu0 0
      %1637 = vmatmul.mubr.bf16.gmra.mxu0 %v1602
      %v1638 = vpop.f32.mrf.mxu0
      %v1639 = vadd.f32 0.0, %v1638
      %v1640 = vpop.f32.mrf.mxu0
      %v1641 = vpop.f32.mrf.mxu0
      %v1642 = vadd.f32 0.0, %v1641
      %v1643 = vpop.f32.mrf.mxu0
      %1644 = vdwg.mxu0
      %v1645 = vadd.f32 %v1588, %v1639
      %v1646 = vadd.f32 %v1589, %v1642
      %s1647 = scalar_lea.vmem %s4, 56
      %v1648 = vld [vmem:[%s1647] sm:$0xf]
      %v1649 = vld [vmem:[%s1647 + $0x4] sm:$0xf]
      %v1652 = vunpack.c.l.b16 %v1648
      %v1653 = vunpack.c.l.b16 %v1649
      %v1654 = vpack.c.b16 %v1653, %v1652
      %1655 = vrot.lane.b32.xlu0 %v1263, 107
      %v1656 = vpop.permute.xlu0 %1655
      %v1659 = vsel %vm1267, %v1654, 0
      %1661 = vmatprep.subr.bf16.mxu0 0
      %1662 = vmatpush1.bf16.msra.mxu0 0
      %1663 = vmatprep.subr.bf16.mxu0 0
      %1664 = vmatpush1.bf16.msra.mxu0 0
      %1665 = vmatprep.subr.bf16.mxu0 0
      %1666 = vmatpush1.bf16.msra.mxu0 0
      %1667 = vmatprep.subr.bf16.mxu0 0
      %1668 = vmatpush1.bf16.msra.mxu0 0
      %1669 = vmatprep.subr.bf16.mxu0 0
      %1670 = vmatpush1.bf16.msra.mxu0 0
      %1671 = vmatprep.subr.bf16.mxu0 0
      %1672 = vmatpush1.bf16.msra.mxu0 0
      %1673 = vmatprep.subr.bf16.mxu0 0
      %1674 = vmatpush1.bf16.msra.mxu0 0
      %1675 = vmatprep.subr.bf16.mxu0 0
      %1676 = vmatpush1.bf16.msra.mxu0 %v1656
      %1677 = vmatprep.subr.bf16.mxu0 0
      %1678 = vmatpush2.bf16.msra.mxu0 0
      %1679 = vmatprep.subr.bf16.mxu0 0
      %1680 = vmatpush2.bf16.msra.mxu0 0
      %1681 = vmatprep.subr.bf16.mxu0 0
      %1682 = vmatpush2.bf16.msra.mxu0 0
      %1683 = vmatprep.subr.bf16.mxu0 0
      %1684 = vmatpush2.bf16.msra.mxu0 0
      %1685 = vmatprep.subr.bf16.mxu0 0
      %1686 = vmatpush2.bf16.msra.mxu0 0
      %1687 = vmatprep.subr.bf16.mxu0 0
      %1688 = vmatpush2.bf16.msra.mxu0 0
      %1689 = vmatprep.subr.bf16.mxu0 0
      %1690 = vmatpush2.bf16.msra.mxu0 0
      %1691 = vmatprep.subr.bf16.mxu0 0
      %1692 = vmatpush2.bf16.msra.mxu0 0
      %1693 = vmatprep.mubr.bf16.mxu0 0
      %1694 = vmatmul.mubr.bf16.gmra.mxu0 %v1659
      %v1695 = vpop.f32.mrf.mxu0
      %v1696 = vadd.f32 0.0, %v1695
      %v1697 = vpop.f32.mrf.mxu0
      %v1698 = vpop.f32.mrf.mxu0
      %v1699 = vadd.f32 0.0, %v1698
      %v1700 = vpop.f32.mrf.mxu0
      %1701 = vdwg.mxu0
      %v1702 = vadd.f32 %v1645, %v1696
      %v1703 = vadd.f32 %v1646, %v1699
      %s1704 = scalar_lea.vmem %s4, 64
      %v1705 = vld [vmem:[%s1704] sm:$0xf]
      %v1706 = vld [vmem:[%s1704 + $0x4] sm:$0xf]
      %v1709 = vunpack.c.l.b16 %v1705
      %v1710 = vunpack.c.l.b16 %v1706
      %v1711 = vpack.c.b16 %v1710, %v1709
      %1712 = vrot.lane.b32.xlu0 %v1263, 106
      %v1713 = vpop.permute.xlu0 %1712
      %v1716 = vsel %vm1267, %v1711, 0
      %1718 = vmatprep.subr.bf16.mxu0 0
      %1719 = vmatpush1.bf16.msra.mxu0 0
      %1720 = vmatprep.subr.bf16.mxu0 0
      %1721 = vmatpush1.bf16.msra.mxu0 0
      %1722 = vmatprep.subr.bf16.mxu0 0
      %1723 = vmatpush1.bf16.msra.mxu0 0
      %1724 = vmatprep.subr.bf16.mxu0 0
      %1725 = vmatpush1.bf16.msra.mxu0 0
      %1726 = vmatprep.subr.bf16.mxu0 0
      %1727 = vmatpush1.bf16.msra.mxu0 0
      %1728 = vmatprep.subr.bf16.mxu0 0
      %1729 = vmatpush1.bf16.msra.mxu0 0
      %1730 = vmatprep.subr.bf16.mxu0 0
      %1731 = vmatpush1.bf16.msra.mxu0 0
      %1732 = vmatprep.subr.bf16.mxu0 0
      %1733 = vmatpush1.bf16.msra.mxu0 %v1713
      %1734 = vmatprep.subr.bf16.mxu0 0
      %1735 = vmatpush2.bf16.msra.mxu0 0
      %1736 = vmatprep.subr.bf16.mxu0 0
      %1737 = vmatpush2.bf16.msra.mxu0 0
      %1738 = vmatprep.subr.bf16.mxu0 0
      %1739 = vmatpush2.bf16.msra.mxu0 0
      %1740 = vmatprep.subr.bf16.mxu0 0
      %1741 = vmatpush2.bf16.msra.mxu0 0
      %1742 = vmatprep.subr.bf16.mxu0 0
      %1743 = vmatpush2.bf16.msra.mxu0 0
      %1744 = vmatprep.subr.bf16.mxu0 0
      %1745 = vmatpush2.bf16.msra.mxu0 0
      %1746 = vmatprep.subr.bf16.mxu0 0
      %1747 = vmatpush2.bf16.msra.mxu0 0
      %1748 = vmatprep.subr.bf16.mxu0 0
      %1749 = vmatpush2.bf16.msra.mxu0 0
      %1750 = vmatprep.mubr.bf16.mxu0 0
      %1751 = vmatmul.mubr.bf16.gmra.mxu0 %v1716
      %v1752 = vpop.f32.mrf.mxu0
      %v1753 = vadd.f32 0.0, %v1752
      %v1754 = vpop.f32.mrf.mxu0
      %v1755 = vpop.f32.mrf.mxu0
      %v1756 = vadd.f32 0.0, %v1755
      %v1757 = vpop.f32.mrf.mxu0
      %1758 = vdwg.mxu0
      %v1759 = vadd.f32 %v1702, %v1753
      %v1760 = vadd.f32 %v1703, %v1756
      %v1761 = vld [vmem:[%s5] sm:$0xff]
      %v1762 = vld [vmem:[%s5 + $0x8] sm:$0xff]
      %1764 = vset.pattern.permute.xlu0 0
      %1765 = vperm.xlu0 %1764, %v1761
      %v1766 = vpop.permute.xlu0 %1765
      %1769 = vset.pattern.permute.xlu0 0
      %1770 = vperm.xlu0 %1769, %v1762
      %v1771 = vpop.permute.xlu0 %1770
      %v1773 = vadd.f32 %v1759, %v1766
      %v1774 = vadd.f32 %v1760, %v1771
      %v1775 = vtanh.pop %v1773
      %v1776 = vtanh.pop %v1774
      %vm1777 = vcmask 637952
      %1778 = vst.msk [vmem:[%s251] sm:$0xff] %vm1777, %v1775
      %1779 = vst.msk [vmem:[%s251 + $0x8] sm:$0xff] %vm1777, %v1776
      %p1780 = scmp.lt.s32.totalorder %s17, 1
      %s1781 = scalar_select %p1780, %s17, 1
      %s1782 = smul.addr %s1781, 2
      %s1783 = smul.addr %s1782, 8
      %s1784 = scalar_lea.vmem %s6, %s1783
      // Predicated region
      $region45: #{outermost_block_forward.1} parent=43 // pred_check
        %p1785 = pneg %p166
      $region46: #{outermost_block_forward.1} parent=43 // pred_check_branch
        %1787 = sbr.rel (%p1785) target = $region48
      $region47: #{outermost_block_forward.1} parent=43 // pred_region
        _
      $region48: #{outermost_block_forward.1} parent=43 // pred_fallthru
        _
    $region44: #{outermost_block_forward.1} parent=5 // pred_fallthru
      _
    %p1788 = scmp.le.s32.totalorder 2, %s12
    // Predicated region
    $region49: #{outermost_block_forward.1} parent=5 // pred_check
      %p1789 = pneg %p1788
    $region50: #{outermost_block_forward.1} parent=5 // pred_check_branch
      %1791 = sbr.rel (%p1789) target = $region52
    $region51: #{outermost_block_forward.1} parent=5 // pred_region
      %s1792 = ssub.s32 %s12, 2
      // Predicated region
      $region53: #{outermost_block_forward.1} parent=51 // pred_check
        %p1793 = pneg %p172
      $region54: #{outermost_block_forward.1} parent=51 // pred_check_branch
        %1795 = sbr.rel (%p1793) target = $region56
      $region55: #{outermost_block_forward.1} parent=51 // pred_region
        %p1796 = scmp.lt.s32.totalorder %s18, 1
        %s1797 = scalar_select %p1796, %s18, 1
        %s1798 = smul.addr %s1797, 2
        %s1799 = smul.addr %s1798, 8
        %s1800 = scalar_lea.vmem %s6, %s1799
      $region56: #{outermost_block_forward.1} parent=51 // pred_fallthru
        _
    $region52: #{outermost_block_forward.1} parent=5 // pred_fallthru
      _
  $region6: #{outermost_block_forward.1} parent=0 // loop_footer
    %s16 = sadd.s32 1, %s12
  $region7: #{outermost_block_forward.1} parent=0 // loop_footer_branch
    %11 = sbr.rel target = $region3
  $region8: #{outermost_block_forward.1} parent=0 // loop_exit
    _

</llo_original>
